<compile_context>
chip_gen: v6e
topology: v6e:2x2x1
jax: 0.10.0
libtpu: 0.0.40
codegen_flags: <defaults>
</compile_context>

<pallas_src>
import functools
import math

import jax
import jax.numpy as jnp
from jax import lax
from jax.experimental import pallas as pl
from jax.experimental.pallas import tpu as pltpu


def encoder_block_kernel(x_ref,                                # (bb, L, H)
                         vlen_ref,                             # (bb, 1) int32
                         wq_ref, wk_ref, wv_ref, wo_ref,       # (H, H) each
                         g1_ref, b1_ref,                       # (1, H) layernorm-1
                         wf1_ref, bf1_ref,                     # (H, F), (1, F)
                         wf2_ref, bf2_ref,                     # (F, H), (1, H)
                         g2_ref, b2_ref,                       # (1, H) layernorm-2
                         out_ref,                              # (bb, L, H)
                         *, num_heads):
    bb, L, H = x_ref.shape
    d = H // num_heads
    N = bb * L
    scale = 1.0 / math.sqrt(d)
    mm_dtype = wq_ref.dtype                      # bf16 in low-precision mode
    low_precision = mm_dtype == jnp.bfloat16

    x = x_ref[...].astype(jnp.float32).reshape(N, H)   # residuals stay f32
    xm = x.astype(mm_dtype)

    # --- QKV projections on the whole (B*L, H) slab (one MXU push each) ---
    q = jnp.dot(xm, wq_ref[...], preferred_element_type=jnp.float32)
    k = jnp.dot(xm, wk_ref[...], preferred_element_type=jnp.float32)
    v = jnp.dot(xm, wv_ref[...], preferred_element_type=jnp.float32)
    q3 = q.reshape(bb, L, H)
    k3 = k.reshape(bb, L, H)
    v3 = v.reshape(bb, L, H)

    # Key mask built once per block: key index < valid_len (d2l masked_softmax)
    col = lax.broadcasted_iota(jnp.int32, (bb, 1, L), 2)
    key_mask = col < vlen_ref[...][:, :, None]            # (bb, 1, L)

    wo = wo_ref[...]
    attn = jnp.zeros((N, H), jnp.float32)
    for h in range(num_heads):                            # static head loop
        sl = slice(h * d, (h + 1) * d)
        qh = q3[:, :, sl].astype(mm_dtype)
        kh = k3[:, :, sl].astype(mm_dtype)
        vh = v3[:, :, sl].astype(mm_dtype)
        # contract on last dim: no explicit kh.T transpose / relayout
        s = jnp.einsum("bqd,bkd->bqk", qh, kh,
                       preferred_element_type=jnp.float32) * scale
        s = jnp.where(key_mask, s, -1e6)                  # masked_softmax fill
        s = s - jnp.max(s, axis=-1, keepdims=True)
        p = jnp.exp(s)
        p = p * pl.reciprocal(jnp.sum(p, axis=-1, keepdims=True),
                              approx=low_precision)
        oh = jnp.einsum("bqk,bkd->bqd", p.astype(mm_dtype), vh,
                        preferred_element_type=jnp.float32)
        # fold W_o per head: no lane-axis concatenate of head outputs
        attn = attn + jnp.dot(oh.reshape(N, d).astype(mm_dtype), wo[sl, :],
                              preferred_element_type=jnp.float32)

    def layer_norm(z, g, beta):
        mu = jnp.mean(z, axis=-1, keepdims=True)
        var = jnp.mean((z - mu) ** 2, axis=-1, keepdims=True)
        return (z - mu) * lax.rsqrt(var + 1e-5) * g + beta

    # --- AddNorm 1 (dropout = identity in eval mode) ---
    y = layer_norm(x + attn, g1_ref[...], b1_ref[...])

    # --- PositionWiseFFN on the flattened slab ---
    h1 = jnp.maximum(
        jnp.dot(y.astype(mm_dtype), wf1_ref[...],
                preferred_element_type=jnp.float32) + bf1_ref[...], 0.0)
    ffn = jnp.dot(h1.astype(mm_dtype), wf2_ref[...],
                  preferred_element_type=jnp.float32) + bf2_ref[...]

    # --- AddNorm 2 ---
    out = layer_norm(y + ffn, g2_ref[...], b2_ref[...])
    out_ref[...] = out.reshape(bb, L, H).astype(out_ref.dtype)


def encoder_block(x, valid_lens, params, num_heads, *,
                  low_precision=False, batch_block=None):
    B, L, H = x.shape
    F_ = params["w_ffn1"].shape[1]
    bb = B if batch_block is None else batch_block
    assert B % bb == 0, "batch_block must divide batch"

    # Matmul weights optionally stored/fed in bf16 (halves weight DMA bytes,
    # f32 accumulation in-kernel). LayerNorm params / biases stay f32.
    mm = jnp.bfloat16 if low_precision else x.dtype
    wq = params["wq"].astype(mm)
    wk = params["wk"].astype(mm)
    wv = params["wv"].astype(mm)
    wo = params["wo"].astype(mm)
    wf1 = params["w_ffn1"].astype(mm)
    wf2 = params["w_ffn2"].astype(mm)

    vlen = valid_lens.reshape(B, 1).astype(jnp.int32)
    kernel = functools.partial(encoder_block_kernel, num_heads=num_heads)

    def replicated(shape):
        zeros = (0,) * len(shape)
        return pl.BlockSpec(shape, lambda i, _z=zeros: _z)

    grid_spec = pltpu.PrefetchScalarGridSpec(
        num_scalar_prefetch=0,
        grid=(B // bb,),
        in_specs=[
            pl.BlockSpec((bb, L, H), lambda i: (i, 0, 0)),   # X batch block
            pl.BlockSpec((bb, 1), lambda i: (i, 0)),         # valid_lens block
            replicated((H, H)), replicated((H, H)),
            replicated((H, H)), replicated((H, H)),
            replicated((1, H)), replicated((1, H)),
            replicated((H, F_)), replicated((1, F_)),
            replicated((F_, H)), replicated((1, H)),
            replicated((1, H)), replicated((1, H)),
        ],
        out_specs=pl.BlockSpec((bb, L, H), lambda i: (i, 0, 0)),
    )
    return pl.pallas_call(
        kernel,
        out_shape=jax.ShapeDtypeStruct((B, L, H), x.dtype),
        grid_spec=grid_spec,
        compiler_params=pltpu.CompilerParams(
            # batch axis is fully independent -> shardable across v7x's 2 TCs
            dimension_semantics=("parallel",)),
    )(x, vlen, wq, wk, wv, wo,
      params["ln1_g"], params["ln1_b"],
      wf1, params["b_ffn1"], wf2, params["b_ffn2"],
      params["ln2_g"], params["ln2_b"])


def encoder_block_reference(x, valid_lens, params, num_heads):
    """Pure-JAX reference reproducing the PyTorch forward (eval mode, f32)."""
    B, L, H = x.shape
    d = H // num_heads
    q, k, v = x @ params["wq"], x @ params["wk"], x @ params["wv"]

    def split(z):
        return z.reshape(B, L, num_heads, d).transpose(0, 2, 1, 3)

    qh, kh, vh = split(q), split(k), split(v)
    scores = jnp.einsum("bhqd,bhkd->bhqk", qh, kh) / math.sqrt(d)
    mask = jnp.arange(L)[None, None, None, :] < valid_lens[:, None, None, None]
    scores = jnp.where(mask, scores, -1e6)
    p = jax.nn.softmax(scores, axis=-1)
    o = jnp.einsum("bhqk,bhkd->bhqd", p, vh).transpose(0, 2, 1, 3).reshape(B, L, H)
    o = o @ params["wo"]

    def ln(z, g, b):
        mu = z.mean(-1, keepdims=True)
        var = ((z - mu) ** 2).mean(-1, keepdims=True)
        return (z - mu) / jnp.sqrt(var + 1e-5) * g + b

    y = ln(x + o, params["ln1_g"], params["ln1_b"])
    f = jnp.maximum(y @ params["w_ffn1"] + params["b_ffn1"], 0.0) @ params["w_ffn2"] \
        + params["b_ffn2"]
    return ln(y + f, params["ln2_g"], params["ln2_b"])


def init_params(key, H, F_):
    ks = jax.random.split(key, 8)
    u = lambda k, shape: jax.random.uniform(k, shape, jnp.float32, -0.1, 0.1)
    return {
        "wq": u(ks[0], (H, H)), "wk": u(ks[1], (H, H)),
        "wv": u(ks[2], (H, H)), "wo": u(ks[3], (H, H)),
        "ln1_g": jnp.ones((1, H), jnp.float32), "ln1_b": jnp.zeros((1, H), jnp.float32),
        "w_ffn1": u(ks[4], (H, F_)), "b_ffn1": u(ks[5], (1, F_)),
        "w_ffn2": u(ks[6], (F_, H)), "b_ffn2": u(ks[7], (1, H)),
        "ln2_g": jnp.ones((1, H), jnp.float32), "ln2_b": jnp.zeros((1, H), jnp.float32),
    }


if __name__ == "__main__":
    B, L, H = 2, 8, 32          # batch, seq, num_hiddens
    num_heads = 4
    F_ = 64                     # ffn_num_hiddens

    key = jax.random.PRNGKey(0)
    kx, kp = jax.random.split(key)
    x = jax.random.normal(kx, (B, L, H), jnp.float32)
    valid_lens = jnp.array([3, 6], dtype=jnp.int32)
    params = init_params(kp, H, F_)

    ref = encoder_block_reference(x, valid_lens, params, num_heads)

    # f32 matmul path: tight check against the pure-JAX reference.
    out_f32 = jax.block_until_ready(
        encoder_block(x, valid_lens, params, num_heads, low_precision=False))
    assert out_f32.shape == (B, L, H)
    assert jnp.allclose(out_f32, ref, atol=1e-4, rtol=1e-4), "f32 kernel mismatch"

    # bf16 matmul-operand path (MXU fast path on v5e/v6e/v7x, f32 accumulation):
    # compared against the f32 reference with a bf16-appropriate tolerance.
    out_bf16 = jax.block_until_ready(
        encoder_block(x, valid_lens, params, num_heads, low_precision=True))
    assert out_bf16.shape == (B, L, H)
    assert jnp.allclose(out_bf16, ref, atol=5e-2, rtol=5e-2), "bf16 kernel mismatch"

    print("KERNEL_OK")
</pallas_src>

<mosaic_0001>
module attributes {stable_mosaic.version = 11 : i64} {
  func.func @encoder_block_kernel(%arg0: i32, %arg1: memref<2x8x32xf32, #tpu.memory_space<vmem>>, %arg2: memref<2x1xi32, #tpu.memory_space<vmem>>, %arg3: memref<32x32xf32, #tpu.memory_space<vmem>>, %arg4: memref<32x32xf32, #tpu.memory_space<vmem>>, %arg5: memref<32x32xf32, #tpu.memory_space<vmem>>, %arg6: memref<32x32xf32, #tpu.memory_space<vmem>>, %arg7: memref<1x32xf32, #tpu.memory_space<vmem>>, %arg8: memref<1x32xf32, #tpu.memory_space<vmem>>, %arg9: memref<32x64xf32, #tpu.memory_space<vmem>>, %arg10: memref<1x64xf32, #tpu.memory_space<vmem>>, %arg11: memref<64x32xf32, #tpu.memory_space<vmem>>, %arg12: memref<1x32xf32, #tpu.memory_space<vmem>>, %arg13: memref<1x32xf32, #tpu.memory_space<vmem>>, %arg14: memref<1x32xf32, #tpu.memory_space<vmem>>, %arg15: memref<2x8x32xf32, #tpu.memory_space<vmem>>) attributes {dimension_semantics = [#tpu.dimension_semantics<parallel>], iteration_bounds = array<i64: 1>, scalar_prefetch = 0 : i64, scratch_operands = 0 : i64, tpu.core_type = #tpu.core_type<tc>, window_params = [{transform_indices = @transform_0, window_bounds = array<i64: 2, 8, 32>}, {transform_indices = @transform_1, window_bounds = array<i64: 2, 1>}, {pipeline_mode = #tpu.pipeline_mode<synchronous>, transform_indices = @transform_2, window_bounds = array<i64: 32, 32>}, {pipeline_mode = #tpu.pipeline_mode<synchronous>, transform_indices = @transform_3, window_bounds = array<i64: 32, 32>}, {pipeline_mode = #tpu.pipeline_mode<synchronous>, transform_indices = @transform_4, window_bounds = array<i64: 32, 32>}, {pipeline_mode = #tpu.pipeline_mode<synchronous>, transform_indices = @transform_5, window_bounds = array<i64: 32, 32>}, {pipeline_mode = #tpu.pipeline_mode<synchronous>, transform_indices = @transform_6, window_bounds = array<i64: 1, 32>}, {pipeline_mode = #tpu.pipeline_mode<synchronous>, transform_indices = @transform_7, window_bounds = array<i64: 1, 32>}, {pipeline_mode = #tpu.pipeline_mode<synchronous>, transform_indices = @transform_8, window_bounds = array<i64: 32, 64>}, {pipeline_mode = #tpu.pipeline_mode<synchronous>, transform_indices = @transform_9, window_bounds = array<i64: 1, 64>}, {pipeline_mode = #tpu.pipeline_mode<synchronous>, transform_indices = @transform_10, window_bounds = array<i64: 64, 32>}, {pipeline_mode = #tpu.pipeline_mode<synchronous>, transform_indices = @transform_11, window_bounds = array<i64: 1, 32>}, {pipeline_mode = #tpu.pipeline_mode<synchronous>, transform_indices = @transform_12, window_bounds = array<i64: 1, 32>}, {pipeline_mode = #tpu.pipeline_mode<synchronous>, transform_indices = @transform_13, window_bounds = array<i64: 1, 32>}, {transform_indices = @transform_14, window_bounds = array<i64: 2, 8, 32>}]} {
    %c0 = arith.constant 0 : index
    %c0_0 = arith.constant 0 : index
    %c0_1 = arith.constant 0 : index
    %0 = vector.load %arg1[%c0, %c0_0, %c0_1] : memref<2x8x32xf32, #tpu.memory_space<vmem>>, vector<2x8x32xf32>
    %1 = vector.shape_cast %0 : vector<2x8x32xf32> to vector<16x32xf32>
    %c0_2 = arith.constant 0 : index
    %c0_3 = arith.constant 0 : index
    %2 = vector.load %arg3[%c0_2, %c0_3] : memref<32x32xf32, #tpu.memory_space<vmem>>, vector<32x32xf32>
    %cst = arith.constant dense<0.000000e+00> : vector<16x32xf32>
    %3 = tpu.matmul %1, %2, %cst {dimension_numbers = #tpu.dot_dimension_numbers<[1], [0], [0], [1], [0, 0, 1, 1], [], []>} : vector<16x32xf32>, vector<32x32xf32>, vector<16x32xf32> -> vector<16x32xf32>
    %c0_4 = arith.constant 0 : index
    %c0_5 = arith.constant 0 : index
    %4 = vector.load %arg4[%c0_4, %c0_5] : memref<32x32xf32, #tpu.memory_space<vmem>>, vector<32x32xf32>
    %cst_6 = arith.constant dense<0.000000e+00> : vector<16x32xf32>
    %5 = tpu.matmul %1, %4, %cst_6 {dimension_numbers = #tpu.dot_dimension_numbers<[1], [0], [0], [1], [0, 0, 1, 1], [], []>} : vector<16x32xf32>, vector<32x32xf32>, vector<16x32xf32> -> vector<16x32xf32>
    %c0_7 = arith.constant 0 : index
    %c0_8 = arith.constant 0 : index
    %6 = vector.load %arg5[%c0_7, %c0_8] : memref<32x32xf32, #tpu.memory_space<vmem>>, vector<32x32xf32>
    %cst_9 = arith.constant dense<0.000000e+00> : vector<16x32xf32>
    %7 = tpu.matmul %1, %6, %cst_9 {dimension_numbers = #tpu.dot_dimension_numbers<[1], [0], [0], [1], [0, 0, 1, 1], [], []>} : vector<16x32xf32>, vector<32x32xf32>, vector<16x32xf32> -> vector<16x32xf32>
    %8 = vector.shape_cast %3 : vector<16x32xf32> to vector<2x8x32xf32>
    %9 = vector.shape_cast %5 : vector<16x32xf32> to vector<2x8x32xf32>
    %10 = vector.shape_cast %7 : vector<16x32xf32> to vector<2x8x32xf32>
    %11 = tpu.iota {dimensions = array<i32: 2>} : vector<2x1x8xi32>
    %c0_10 = arith.constant 0 : index
    %c0_11 = arith.constant 0 : index
    %12 = vector.load %arg2[%c0_10, %c0_11] : memref<2x1xi32, #tpu.memory_space<vmem>>, vector<2x1xi32>
    %13 = vector.shape_cast %12 : vector<2x1xi32> to vector<2x1x1xi32>
    %14 = vector.broadcast %13 : vector<2x1x1xi32> to vector<2x1x8xi32>
    %15 = arith.cmpi slt, %11, %14 : vector<2x1x8xi32>
    %c0_12 = arith.constant 0 : index
    %c0_13 = arith.constant 0 : index
    %16 = vector.load %arg6[%c0_12, %c0_13] : memref<32x32xf32, #tpu.memory_space<vmem>>, vector<32x32xf32>
    %cst_14 = arith.constant 0.000000e+00 : f32
    %17 = vector.broadcast %cst_14 : f32 to vector<16x32xf32>
    %18 = vector.extract_strided_slice %8 {offsets = [0, 0, 0], sizes = [2, 8, 8], strides = [1, 1, 1]} : vector<2x8x32xf32> to vector<2x8x8xf32>
    %19 = vector.extract_strided_slice %9 {offsets = [0, 0, 0], sizes = [2, 8, 8], strides = [1, 1, 1]} : vector<2x8x32xf32> to vector<2x8x8xf32>
    %20 = vector.extract_strided_slice %10 {offsets = [0, 0, 0], sizes = [2, 8, 8], strides = [1, 1, 1]} : vector<2x8x32xf32> to vector<2x8x8xf32>
    "tpu.trace_start"() <{level = 10 : i32, message = "bqd,bkd->bqk"}> : () -> ()
    %cst_15 = arith.constant dense<0.000000e+00> : vector<2x8x8xf32>
    %21 = tpu.matmul %18, %19, %cst_15 {dimension_numbers = #tpu.dot_dimension_numbers<[2], [2], [1], [1], [0, 0, 0, 1, 1, 1], [0], [0]>} : vector<2x8x8xf32>, vector<2x8x8xf32>, vector<2x8x8xf32> -> vector<2x8x8xf32>
    "tpu.trace_stop"() : () -> ()
    %cst_16 = arith.constant 0.353553385 : f32
    %22 = vector.broadcast %cst_16 : f32 to vector<2x8x8xf32>
    %23 = arith.mulf %21, %22 : vector<2x8x8xf32>
    %cst_17 = arith.constant -1.000000e+06 : f32
    %24 = vector.shape_cast %15 : vector<2x1x8xi1> to vector<2x1x8xi1>
    %25 = vector.broadcast %24 : vector<2x1x8xi1> to vector<2x8x8xi1>
    %26 = vector.broadcast %cst_17 : f32 to vector<2x8x8xf32>
    %27 = arith.select %25, %23, %26 : vector<2x8x8xi1>, vector<2x8x8xf32>
    %cst_18 = arith.constant dense<0xFF800000> : vector<2x8xf32>
    %28 = vector.multi_reduction <maximumf>, %27, %cst_18 [2] : vector<2x8x8xf32> to vector<2x8xf32>
    %29 = vector.shape_cast %28 : vector<2x8xf32> to vector<2x8x1xf32>
    %30 = vector.broadcast %29 : vector<2x8x1xf32> to vector<2x8x8xf32>
    %31 = arith.subf %27, %30 : vector<2x8x8xf32>
    %32 = math.exp %31 : vector<2x8x8xf32>
    %cst_19 = arith.constant dense<0.000000e+00> : vector<2x8xf32>
    %33 = vector.multi_reduction <add>, %32, %cst_19 [2] : vector<2x8x8xf32> to vector<2x8xf32>
    %34 = vector.shape_cast %33 : vector<2x8xf32> to vector<2x8x1xf32>
    %35 = tpu.reciprocal %34 : vector<2x8x1xf32> -> vector<2x8x1xf32>
    %36 = vector.broadcast %35 : vector<2x8x1xf32> to vector<2x8x8xf32>
    %37 = arith.mulf %32, %36 : vector<2x8x8xf32>
    "tpu.trace_start"() <{level = 10 : i32, message = "bqk,bkd->bqd"}> : () -> ()
    %cst_20 = arith.constant dense<0.000000e+00> : vector<2x8x8xf32>
    %38 = tpu.matmul %37, %20, %cst_20 {dimension_numbers = #tpu.dot_dimension_numbers<[2], [1], [1], [2], [0, 0, 0, 1, 1, 2], [0], [0]>} : vector<2x8x8xf32>, vector<2x8x8xf32>, vector<2x8x8xf32> -> vector<2x8x8xf32>
    "tpu.trace_stop"() : () -> ()
    %39 = vector.shape_cast %38 : vector<2x8x8xf32> to vector<16x8xf32>
    %40 = vector.extract_strided_slice %16 {offsets = [0, 0], sizes = [8, 32], strides = [1, 1]} : vector<32x32xf32> to vector<8x32xf32>
    %cst_21 = arith.constant dense<0.000000e+00> : vector<16x32xf32>
    %41 = tpu.matmul %39, %40, %cst_21 {dimension_numbers = #tpu.dot_dimension_numbers<[1], [0], [0], [1], [0, 0, 1, 1], [], []>} : vector<16x8xf32>, vector<8x32xf32>, vector<16x32xf32> -> vector<16x32xf32>
    %42 = arith.addf %17, %41 : vector<16x32xf32>
    %43 = vector.extract_strided_slice %8 {offsets = [0, 0, 8], sizes = [2, 8, 8], strides = [1, 1, 1]} : vector<2x8x32xf32> to vector<2x8x8xf32>
    %44 = vector.extract_strided_slice %9 {offsets = [0, 0, 8], sizes = [2, 8, 8], strides = [1, 1, 1]} : vector<2x8x32xf32> to vector<2x8x8xf32>
    %45 = vector.extract_strided_slice %10 {offsets = [0, 0, 8], sizes = [2, 8, 8], strides = [1, 1, 1]} : vector<2x8x32xf32> to vector<2x8x8xf32>
    "tpu.trace_start"() <{level = 10 : i32, message = "bqd,bkd->bqk"}> : () -> ()
    %cst_22 = arith.constant dense<0.000000e+00> : vector<2x8x8xf32>
    %46 = tpu.matmul %43, %44, %cst_22 {dimension_numbers = #tpu.dot_dimension_numbers<[2], [2], [1], [1], [0, 0, 0, 1, 1, 1], [0], [0]>} : vector<2x8x8xf32>, vector<2x8x8xf32>, vector<2x8x8xf32> -> vector<2x8x8xf32>
    "tpu.trace_stop"() : () -> ()
    %cst_23 = arith.constant 0.353553385 : f32
    %47 = vector.broadcast %cst_23 : f32 to vector<2x8x8xf32>
    %48 = arith.mulf %46, %47 : vector<2x8x8xf32>
    %cst_24 = arith.constant -1.000000e+06 : f32
    %49 = vector.shape_cast %15 : vector<2x1x8xi1> to vector<2x1x8xi1>
    %50 = vector.broadcast %49 : vector<2x1x8xi1> to vector<2x8x8xi1>
    %51 = vector.broadcast %cst_24 : f32 to vector<2x8x8xf32>
    %52 = arith.select %50, %48, %51 : vector<2x8x8xi1>, vector<2x8x8xf32>
    %cst_25 = arith.constant dense<0xFF800000> : vector<2x8xf32>
    %53 = vector.multi_reduction <maximumf>, %52, %cst_25 [2] : vector<2x8x8xf32> to vector<2x8xf32>
    %54 = vector.shape_cast %53 : vector<2x8xf32> to vector<2x8x1xf32>
    %55 = vector.broadcast %54 : vector<2x8x1xf32> to vector<2x8x8xf32>
    %56 = arith.subf %52, %55 : vector<2x8x8xf32>
    %57 = math.exp %56 : vector<2x8x8xf32>
    %cst_26 = arith.constant dense<0.000000e+00> : vector<2x8xf32>
    %58 = vector.multi_reduction <add>, %57, %cst_26 [2] : vector<2x8x8xf32> to vector<2x8xf32>
    %59 = vector.shape_cast %58 : vector<2x8xf32> to vector<2x8x1xf32>
    %60 = tpu.reciprocal %59 : vector<2x8x1xf32> -> vector<2x8x1xf32>
    %61 = vector.broadcast %60 : vector<2x8x1xf32> to vector<2x8x8xf32>
    %62 = arith.mulf %57, %61 : vector<2x8x8xf32>
    "tpu.trace_start"() <{level = 10 : i32, message = "bqk,bkd->bqd"}> : () -> ()
    %cst_27 = arith.constant dense<0.000000e+00> : vector<2x8x8xf32>
    %63 = tpu.matmul %62, %45, %cst_27 {dimension_numbers = #tpu.dot_dimension_numbers<[2], [1], [1], [2], [0, 0, 0, 1, 1, 2], [0], [0]>} : vector<2x8x8xf32>, vector<2x8x8xf32>, vector<2x8x8xf32> -> vector<2x8x8xf32>
    "tpu.trace_stop"() : () -> ()
    %64 = vector.shape_cast %63 : vector<2x8x8xf32> to vector<16x8xf32>
    %65 = vector.extract_strided_slice %16 {offsets = [8, 0], sizes = [8, 32], strides = [1, 1]} : vector<32x32xf32> to vector<8x32xf32>
    %cst_28 = arith.constant dense<0.000000e+00> : vector<16x32xf32>
    %66 = tpu.matmul %64, %65, %cst_28 {dimension_numbers = #tpu.dot_dimension_numbers<[1], [0], [0], [1], [0, 0, 1, 1], [], []>} : vector<16x8xf32>, vector<8x32xf32>, vector<16x32xf32> -> vector<16x32xf32>
    %67 = arith.addf %42, %66 : vector<16x32xf32>
    %68 = vector.extract_strided_slice %8 {offsets = [0, 0, 16], sizes = [2, 8, 8], strides = [1, 1, 1]} : vector<2x8x32xf32> to vector<2x8x8xf32>
    %69 = vector.extract_strided_slice %9 {offsets = [0, 0, 16], sizes = [2, 8, 8], strides = [1, 1, 1]} : vector<2x8x32xf32> to vector<2x8x8xf32>
    %70 = vector.extract_strided_slice %10 {offsets = [0, 0, 16], sizes = [2, 8, 8], strides = [1, 1, 1]} : vector<2x8x32xf32> to vector<2x8x8xf32>
    "tpu.trace_start"() <{level = 10 : i32, message = "bqd,bkd->bqk"}> : () -> ()
    %cst_29 = arith.constant dense<0.000000e+00> : vector<2x8x8xf32>
    %71 = tpu.matmul %68, %69, %cst_29 {dimension_numbers = #tpu.dot_dimension_numbers<[2], [2], [1], [1], [0, 0, 0, 1, 1, 1], [0], [0]>} : vector<2x8x8xf32>, vector<2x8x8xf32>, vector<2x8x8xf32> -> vector<2x8x8xf32>
    "tpu.trace_stop"() : () -> ()
    %cst_30 = arith.constant 0.353553385 : f32
    %72 = vector.broadcast %cst_30 : f32 to vector<2x8x8xf32>
    %73 = arith.mulf %71, %72 : vector<2x8x8xf32>
    %cst_31 = arith.constant -1.000000e+06 : f32
    %74 = vector.shape_cast %15 : vector<2x1x8xi1> to vector<2x1x8xi1>
    %75 = vector.broadcast %74 : vector<2x1x8xi1> to vector<2x8x8xi1>
    %76 = vector.broadcast %cst_31 : f32 to vector<2x8x8xf32>
    %77 = arith.select %75, %73, %76 : vector<2x8x8xi1>, vector<2x8x8xf32>
    %cst_32 = arith.constant dense<0xFF800000> : vector<2x8xf32>
    %78 = vector.multi_reduction <maximumf>, %77, %cst_32 [2] : vector<2x8x8xf32> to vector<2x8xf32>
    %79 = vector.shape_cast %78 : vector<2x8xf32> to vector<2x8x1xf32>
    %80 = vector.broadcast %79 : vector<2x8x1xf32> to vector<2x8x8xf32>
    %81 = arith.subf %77, %80 : vector<2x8x8xf32>
    %82 = math.exp %81 : vector<2x8x8xf32>
    %cst_33 = arith.constant dense<0.000000e+00> : vector<2x8xf32>
    %83 = vector.multi_reduction <add>, %82, %cst_33 [2] : vector<2x8x8xf32> to vector<2x8xf32>
    %84 = vector.shape_cast %83 : vector<2x8xf32> to vector<2x8x1xf32>
    %85 = tpu.reciprocal %84 : vector<2x8x1xf32> -> vector<2x8x1xf32>
    %86 = vector.broadcast %85 : vector<2x8x1xf32> to vector<2x8x8xf32>
    %87 = arith.mulf %82, %86 : vector<2x8x8xf32>
    "tpu.trace_start"() <{level = 10 : i32, message = "bqk,bkd->bqd"}> : () -> ()
    %cst_34 = arith.constant dense<0.000000e+00> : vector<2x8x8xf32>
    %88 = tpu.matmul %87, %70, %cst_34 {dimension_numbers = #tpu.dot_dimension_numbers<[2], [1], [1], [2], [0, 0, 0, 1, 1, 2], [0], [0]>} : vector<2x8x8xf32>, vector<2x8x8xf32>, vector<2x8x8xf32> -> vector<2x8x8xf32>
    "tpu.trace_stop"() : () -> ()
    %89 = vector.shape_cast %88 : vector<2x8x8xf32> to vector<16x8xf32>
    %90 = vector.extract_strided_slice %16 {offsets = [16, 0], sizes = [8, 32], strides = [1, 1]} : vector<32x32xf32> to vector<8x32xf32>
    %cst_35 = arith.constant dense<0.000000e+00> : vector<16x32xf32>
    %91 = tpu.matmul %89, %90, %cst_35 {dimension_numbers = #tpu.dot_dimension_numbers<[1], [0], [0], [1], [0, 0, 1, 1], [], []>} : vector<16x8xf32>, vector<8x32xf32>, vector<16x32xf32> -> vector<16x32xf32>
    %92 = arith.addf %67, %91 : vector<16x32xf32>
    %93 = vector.extract_strided_slice %8 {offsets = [0, 0, 24], sizes = [2, 8, 8], strides = [1, 1, 1]} : vector<2x8x32xf32> to vector<2x8x8xf32>
    %94 = vector.extract_strided_slice %9 {offsets = [0, 0, 24], sizes = [2, 8, 8], strides = [1, 1, 1]} : vector<2x8x32xf32> to vector<2x8x8xf32>
    %95 = vector.extract_strided_slice %10 {offsets = [0, 0, 24], sizes = [2, 8, 8], strides = [1, 1, 1]} : vector<2x8x32xf32> to vector<2x8x8xf32>
    "tpu.trace_start"() <{level = 10 : i32, message = "bqd,bkd->bqk"}> : () -> ()
    %cst_36 = arith.constant dense<0.000000e+00> : vector<2x8x8xf32>
    %96 = tpu.matmul %93, %94, %cst_36 {dimension_numbers = #tpu.dot_dimension_numbers<[2], [2], [1], [1], [0, 0, 0, 1, 1, 1], [0], [0]>} : vector<2x8x8xf32>, vector<2x8x8xf32>, vector<2x8x8xf32> -> vector<2x8x8xf32>
    "tpu.trace_stop"() : () -> ()
    %cst_37 = arith.constant 0.353553385 : f32
    %97 = vector.broadcast %cst_37 : f32 to vector<2x8x8xf32>
    %98 = arith.mulf %96, %97 : vector<2x8x8xf32>
    %cst_38 = arith.constant -1.000000e+06 : f32
    %99 = vector.shape_cast %15 : vector<2x1x8xi1> to vector<2x1x8xi1>
    %100 = vector.broadcast %99 : vector<2x1x8xi1> to vector<2x8x8xi1>
    %101 = vector.broadcast %cst_38 : f32 to vector<2x8x8xf32>
    %102 = arith.select %100, %98, %101 : vector<2x8x8xi1>, vector<2x8x8xf32>
    %cst_39 = arith.constant dense<0xFF800000> : vector<2x8xf32>
    %103 = vector.multi_reduction <maximumf>, %102, %cst_39 [2] : vector<2x8x8xf32> to vector<2x8xf32>
    %104 = vector.shape_cast %103 : vector<2x8xf32> to vector<2x8x1xf32>
    %105 = vector.broadcast %104 : vector<2x8x1xf32> to vector<2x8x8xf32>
    %106 = arith.subf %102, %105 : vector<2x8x8xf32>
    %107 = math.exp %106 : vector<2x8x8xf32>
    %cst_40 = arith.constant dense<0.000000e+00> : vector<2x8xf32>
    %108 = vector.multi_reduction <add>, %107, %cst_40 [2] : vector<2x8x8xf32> to vector<2x8xf32>
    %109 = vector.shape_cast %108 : vector<2x8xf32> to vector<2x8x1xf32>
    %110 = tpu.reciprocal %109 : vector<2x8x1xf32> -> vector<2x8x1xf32>
    %111 = vector.broadcast %110 : vector<2x8x1xf32> to vector<2x8x8xf32>
    %112 = arith.mulf %107, %111 : vector<2x8x8xf32>
    "tpu.trace_start"() <{level = 10 : i32, message = "bqk,bkd->bqd"}> : () -> ()
    %cst_41 = arith.constant dense<0.000000e+00> : vector<2x8x8xf32>
    %113 = tpu.matmul %112, %95, %cst_41 {dimension_numbers = #tpu.dot_dimension_numbers<[2], [1], [1], [2], [0, 0, 0, 1, 1, 2], [0], [0]>} : vector<2x8x8xf32>, vector<2x8x8xf32>, vector<2x8x8xf32> -> vector<2x8x8xf32>
    "tpu.trace_stop"() : () -> ()
    %114 = vector.shape_cast %113 : vector<2x8x8xf32> to vector<16x8xf32>
    %115 = vector.extract_strided_slice %16 {offsets = [24, 0], sizes = [8, 32], strides = [1, 1]} : vector<32x32xf32> to vector<8x32xf32>
    %cst_42 = arith.constant dense<0.000000e+00> : vector<16x32xf32>
    %116 = tpu.matmul %114, %115, %cst_42 {dimension_numbers = #tpu.dot_dimension_numbers<[1], [0], [0], [1], [0, 0, 1, 1], [], []>} : vector<16x8xf32>, vector<8x32xf32>, vector<16x32xf32> -> vector<16x32xf32>
    %117 = arith.addf %92, %116 : vector<16x32xf32>
    %118 = arith.addf %1, %117 : vector<16x32xf32>
    %c0_43 = arith.constant 0 : index
    %c0_44 = arith.constant 0 : index
    %119 = vector.load %arg7[%c0_43, %c0_44] : memref<1x32xf32, #tpu.memory_space<vmem>>, vector<1x32xf32>
    %c0_45 = arith.constant 0 : index
    %c0_46 = arith.constant 0 : index
    %120 = vector.load %arg8[%c0_45, %c0_46] : memref<1x32xf32, #tpu.memory_space<vmem>>, vector<1x32xf32>
    %cst_47 = arith.constant dense<0.000000e+00> : vector<16xf32>
    %121 = vector.multi_reduction <add>, %118, %cst_47 [1] : vector<16x32xf32> to vector<16xf32>
    %122 = vector.shape_cast %121 : vector<16xf32> to vector<16x1xf32>
    %cst_48 = arith.constant 3.200000e+01 : f32
    %123 = vector.broadcast %cst_48 : f32 to vector<16x1xf32>
    %124 = arith.divf %122, %123 : vector<16x1xf32>
    %125 = vector.broadcast %124 : vector<16x1xf32> to vector<16x32xf32>
    %126 = arith.subf %118, %125 : vector<16x32xf32>
    %127 = arith.mulf %126, %126 : vector<16x32xf32>
    %cst_49 = arith.constant dense<0.000000e+00> : vector<16xf32>
    %128 = vector.multi_reduction <add>, %127, %cst_49 [1] : vector<16x32xf32> to vector<16xf32>
    %129 = vector.shape_cast %128 : vector<16xf32> to vector<16x1xf32>
    %cst_50 = arith.constant 3.200000e+01 : f32
    %130 = vector.broadcast %cst_50 : f32 to vector<16x1xf32>
    %131 = arith.divf %129, %130 : vector<16x1xf32>
    %132 = vector.broadcast %124 : vector<16x1xf32> to vector<16x32xf32>
    %133 = arith.subf %118, %132 : vector<16x32xf32>
    %cst_51 = arith.constant 9.99999974E-6 : f32
    %134 = vector.broadcast %cst_51 : f32 to vector<16x1xf32>
    %135 = arith.addf %131, %134 : vector<16x1xf32>
    %136 = math.rsqrt %135 : vector<16x1xf32>
    %137 = vector.broadcast %136 : vector<16x1xf32> to vector<16x32xf32>
    %138 = arith.mulf %133, %137 : vector<16x32xf32>
    %139 = vector.broadcast %119 : vector<1x32xf32> to vector<16x32xf32>
    %140 = arith.mulf %138, %139 : vector<16x32xf32>
    %141 = vector.broadcast %120 : vector<1x32xf32> to vector<16x32xf32>
    %142 = arith.addf %140, %141 : vector<16x32xf32>
    %c0_52 = arith.constant 0 : index
    %c0_53 = arith.constant 0 : index
    %143 = vector.load %arg9[%c0_52, %c0_53] : memref<32x64xf32, #tpu.memory_space<vmem>>, vector<32x64xf32>
    %cst_54 = arith.constant dense<0.000000e+00> : vector<16x64xf32>
    %144 = tpu.matmul %142, %143, %cst_54 {dimension_numbers = #tpu.dot_dimension_numbers<[1], [0], [0], [1], [0, 0, 1, 1], [], []>} : vector<16x32xf32>, vector<32x64xf32>, vector<16x64xf32> -> vector<16x64xf32>
    %c0_55 = arith.constant 0 : index
    %c0_56 = arith.constant 0 : index
    %145 = vector.load %arg10[%c0_55, %c0_56] : memref<1x64xf32, #tpu.memory_space<vmem>>, vector<1x64xf32>
    %146 = vector.broadcast %145 : vector<1x64xf32> to vector<16x64xf32>
    %147 = arith.addf %144, %146 : vector<16x64xf32>
    %cst_57 = arith.constant 0.000000e+00 : f32
    %148 = vector.broadcast %cst_57 : f32 to vector<16x64xf32>
    %149 = arith.maximumf %147, %148 : vector<16x64xf32>
    %c0_58 = arith.constant 0 : index
    %c0_59 = arith.constant 0 : index
    %150 = vector.load %arg11[%c0_58, %c0_59] : memref<64x32xf32, #tpu.memory_space<vmem>>, vector<64x32xf32>
    %cst_60 = arith.constant dense<0.000000e+00> : vector<16x32xf32>
    %151 = tpu.matmul %149, %150, %cst_60 {dimension_numbers = #tpu.dot_dimension_numbers<[1], [0], [0], [1], [0, 0, 1, 1], [], []>} : vector<16x64xf32>, vector<64x32xf32>, vector<16x32xf32> -> vector<16x32xf32>
    %c0_61 = arith.constant 0 : index
    %c0_62 = arith.constant 0 : index
    %152 = vector.load %arg12[%c0_61, %c0_62] : memref<1x32xf32, #tpu.memory_space<vmem>>, vector<1x32xf32>
    %153 = vector.broadcast %152 : vector<1x32xf32> to vector<16x32xf32>
    %154 = arith.addf %151, %153 : vector<16x32xf32>
    %155 = arith.addf %142, %154 : vector<16x32xf32>
    %c0_63 = arith.constant 0 : index
    %c0_64 = arith.constant 0 : index
    %156 = vector.load %arg13[%c0_63, %c0_64] : memref<1x32xf32, #tpu.memory_space<vmem>>, vector<1x32xf32>
    %c0_65 = arith.constant 0 : index
    %c0_66 = arith.constant 0 : index
    %157 = vector.load %arg14[%c0_65, %c0_66] : memref<1x32xf32, #tpu.memory_space<vmem>>, vector<1x32xf32>
    %cst_67 = arith.constant dense<0.000000e+00> : vector<16xf32>
    %158 = vector.multi_reduction <add>, %155, %cst_67 [1] : vector<16x32xf32> to vector<16xf32>
    %159 = vector.shape_cast %158 : vector<16xf32> to vector<16x1xf32>
    %cst_68 = arith.constant 3.200000e+01 : f32
    %160 = vector.broadcast %cst_68 : f32 to vector<16x1xf32>
    %161 = arith.divf %159, %160 : vector<16x1xf32>
    %162 = vector.broadcast %161 : vector<16x1xf32> to vector<16x32xf32>
    %163 = arith.subf %155, %162 : vector<16x32xf32>
    %164 = arith.mulf %163, %163 : vector<16x32xf32>
    %cst_69 = arith.constant dense<0.000000e+00> : vector<16xf32>
    %165 = vector.multi_reduction <add>, %164, %cst_69 [1] : vector<16x32xf32> to vector<16xf32>
    %166 = vector.shape_cast %165 : vector<16xf32> to vector<16x1xf32>
    %cst_70 = arith.constant 3.200000e+01 : f32
    %167 = vector.broadcast %cst_70 : f32 to vector<16x1xf32>
    %168 = arith.divf %166, %167 : vector<16x1xf32>
    %169 = vector.broadcast %161 : vector<16x1xf32> to vector<16x32xf32>
    %170 = arith.subf %155, %169 : vector<16x32xf32>
    %cst_71 = arith.constant 9.99999974E-6 : f32
    %171 = vector.broadcast %cst_71 : f32 to vector<16x1xf32>
    %172 = arith.addf %168, %171 : vector<16x1xf32>
    %173 = math.rsqrt %172 : vector<16x1xf32>
    %174 = vector.broadcast %173 : vector<16x1xf32> to vector<16x32xf32>
    %175 = arith.mulf %170, %174 : vector<16x32xf32>
    %176 = vector.broadcast %156 : vector<1x32xf32> to vector<16x32xf32>
    %177 = arith.mulf %175, %176 : vector<16x32xf32>
    %178 = vector.broadcast %157 : vector<1x32xf32> to vector<16x32xf32>
    %179 = arith.addf %177, %178 : vector<16x32xf32>
    %180 = vector.shape_cast %179 : vector<16x32xf32> to vector<2x8x32xf32>
    %c0_72 = arith.constant 0 : index
    %c0_73 = arith.constant 0 : index
    %c0_74 = arith.constant 0 : index
    %181 = vector.load %arg15[%c0_72, %c0_73, %c0_74] : memref<2x8x32xf32, #tpu.memory_space<vmem>>, vector<2x8x32xf32>
    tpu.vector_store %arg15[%c0_72, %c0_73, %c0_74], %180 {strides = array<i32>} : memref<2x8x32xf32, #tpu.memory_space<vmem>>, vector<2x8x32xf32>,
    return
  }
  func.func @transform_0(%arg0: i32) -> (i32, i32, i32) {
    %c0_i32 = arith.constant 0 : i32
    %c0_i32_0 = arith.constant 0 : i32
    %c0_i32_1 = arith.constant 0 : i32
    return %arg0, %c0_i32, %c0_i32_0 : i32, i32, i32
  }
  func.func @transform_1(%arg0: i32) -> (i32, i32) {
    %c0_i32 = arith.constant 0 : i32
    %c0_i32_0 = arith.constant 0 : i32
    return %arg0, %c0_i32 : i32, i32
  }
  func.func @transform_2(%arg0: i32) -> (i32, i32) {
    %c0_i32 = arith.constant 0 : i32
    %c0_i32_0 = arith.constant 0 : i32
    %c0_i32_1 = arith.constant 0 : i32
    return %c0_i32, %c0_i32_0 : i32, i32
  }
  func.func @transform_3(%arg0: i32) -> (i32, i32) {
    %c0_i32 = arith.constant 0 : i32
    %c0_i32_0 = arith.constant 0 : i32
    %c0_i32_1 = arith.constant 0 : i32
    return %c0_i32, %c0_i32_0 : i32, i32
  }
  func.func @transform_4(%arg0: i32) -> (i32, i32) {
    %c0_i32 = arith.constant 0 : i32
    %c0_i32_0 = arith.constant 0 : i32
    %c0_i32_1 = arith.constant 0 : i32
    return %c0_i32, %c0_i32_0 : i32, i32
  }
  func.func @transform_5(%arg0: i32) -> (i32, i32) {
    %c0_i32 = arith.constant 0 : i32
    %c0_i32_0 = arith.constant 0 : i32
    %c0_i32_1 = arith.constant 0 : i32
    return %c0_i32, %c0_i32_0 : i32, i32
  }
  func.func @transform_6(%arg0: i32) -> (i32, i32) {
    %c0_i32 = arith.constant 0 : i32
    %c0_i32_0 = arith.constant 0 : i32
    %c0_i32_1 = arith.constant 0 : i32
    return %c0_i32, %c0_i32_0 : i32, i32
  }
  func.func @transform_7(%arg0: i32) -> (i32, i32) {
    %c0_i32 = arith.constant 0 : i32
    %c0_i32_0 = arith.constant 0 : i32
    %c0_i32_1 = arith.constant 0 : i32
    return %c0_i32, %c0_i32_0 : i32, i32
  }
  func.func @transform_8(%arg0: i32) -> (i32, i32) {
    %c0_i32 = arith.constant 0 : i32
    %c0_i32_0 = arith.constant 0 : i32
    %c0_i32_1 = arith.constant 0 : i32
    return %c0_i32, %c0_i32_0 : i32, i32
  }
  func.func @transform_9(%arg0: i32) -> (i32, i32) {
    %c0_i32 = arith.constant 0 : i32
    %c0_i32_0 = arith.constant 0 : i32
    %c0_i32_1 = arith.constant 0 : i32
    return %c0_i32, %c0_i32_0 : i32, i32
  }
  func.func @transform_10(%arg0: i32) -> (i32, i32) {
    %c0_i32 = arith.constant 0 : i32
    %c0_i32_0 = arith.constant 0 : i32
    %c0_i32_1 = arith.constant 0 : i32
    return %c0_i32, %c0_i32_0 : i32, i32
  }
  func.func @transform_11(%arg0: i32) -> (i32, i32) {
    %c0_i32 = arith.constant 0 : i32
    %c0_i32_0 = arith.constant 0 : i32
    %c0_i32_1 = arith.constant 0 : i32
    return %c0_i32, %c0_i32_0 : i32, i32
  }
  func.func @transform_12(%arg0: i32) -> (i32, i32) {
    %c0_i32 = arith.constant 0 : i32
    %c0_i32_0 = arith.constant 0 : i32
    %c0_i32_1 = arith.constant 0 : i32
    return %c0_i32, %c0_i32_0 : i32, i32
  }
  func.func @transform_13(%arg0: i32) -> (i32, i32) {
    %c0_i32 = arith.constant 0 : i32
    %c0_i32_0 = arith.constant 0 : i32
    %c0_i32_1 = arith.constant 0 : i32
    return %c0_i32, %c0_i32_0 : i32, i32
  }
  func.func @transform_14(%arg0: i32) -> (i32, i32, i32) {
    %c0_i32 = arith.constant 0 : i32
    %c0_i32_0 = arith.constant 0 : i32
    %c0_i32_1 = arith.constant 0 : i32
    return %arg0, %c0_i32, %c0_i32_0 : i32, i32, i32
  }
}

</mosaic_0001>

<llo_original>
// kernel: tpu_custom_call.1
$region0: #{tpu_custom_call.1}
  #allocation0 [shape = 'u32[]', space=smem, size = 0x4, offset = 0x4, fixed_abs, tag = 'smem constant byte address 0x4 - core index']
  #allocation1 [shape = 'u32[144,128]{1,0:T(1,128)}', space=vmem, size = 0x12000, scoped, tag = 'internal scratch']
  %s0 = inlined_call_operand.hbm [shape: f32[2,8,32], index: 0, kind: input, shape index: {}]
  %s1 = inlined_call_operand.vmem [shape: s32[2,1], index: 1, kind: input, shape index: {}]
  %s2 = inlined_call_operand.vmem [shape: f32[32,32], index: 2, kind: input, shape index: {}]
  %s3 = inlined_call_operand.vmem [shape: f32[32,32], index: 3, kind: input, shape index: {}]
  %s4 = inlined_call_operand.vmem [shape: f32[32,32], index: 4, kind: input, shape index: {}]
  %s5 = inlined_call_operand.hbm [shape: f32[32,32], index: 5, kind: input, shape index: {}]
  %s6 = inlined_call_operand.vmem [shape: f32[1,32], index: 6, kind: input, shape index: {}]
  %s7 = inlined_call_operand.vmem [shape: f32[1,32], index: 7, kind: input, shape index: {}]
  %s8 = inlined_call_operand.hbm [shape: f32[32,64], index: 8, kind: input, shape index: {}]
  %s9 = inlined_call_operand.vmem [shape: f32[1,64], index: 9, kind: input, shape index: {}]
  %s10 = inlined_call_operand.vmem [shape: f32[64,32], index: 10, kind: input, shape index: {}]
  %s11 = inlined_call_operand.vmem [shape: f32[1,32], index: 11, kind: input, shape index: {}]
  %s12 = inlined_call_operand.vmem [shape: f32[1,32], index: 12, kind: input, shape index: {}]
  %s13 = inlined_call_operand.vmem [shape: f32[1,32], index: 13, kind: input, shape index: {}]
  %s14 = inlined_call_operand.hbm [shape: f32[2,8,32], index: 14, kind: output, shape index: {}]
  %s15 = sld [smem:[#allocation0]]
  $region78: #{tpu_custom_call.1} parent=0
    _
  %s17 = ssub.s32 1, %s15
  %s18 = scalar_select 0, %s17, %s15
  $region1: #{tpu_custom_call.1} parent=0
    #allocation2 [shape = 'u8[8192]{0}', space=vmem, size = 0x2000, scoped, tag = 'input window, operand 0, single buffered']
    #allocation3 [shape = 's32[1]{0}', space=sflag, size = 0x4, scoped, tag = 'scoped memory for tpu_custom_call.1']
    #allocation4 [shape = 's32[1]{0}', space=sflag, size = 0x4, scoped, tag = 'scoped memory for tpu_custom_call.1']
    #allocation5 [shape = 'u8[16384]{0}', space=vmem, size = 0x4000, scoped, tag = 'input window, operand 5, single buffered']
    #allocation6 [shape = 's32[1]{0}', space=sflag, size = 0x4, scoped, tag = 'scoped memory for tpu_custom_call.1']
    #allocation7 [shape = 'u8[16384]{0}', space=vmem, size = 0x4000, scoped, tag = 'input window, operand 8, single buffered']
    #allocation8 [shape = 'u8[8192]{0}', space=vmem, size = 0x2000, scoped, tag = 'output window, operand 0, single buffered']
    %19 = vsyncpa [#allocation3], 0
    %20 = vsyncpa [#allocation6], 0
    %21 = vsyncpa [#allocation4], 0
    // Predicated region
    $region2: #{tpu_custom_call.1} parent=1 // pred_check
      _
    $region3: #{tpu_custom_call.1} parent=1 // pred_check_branch
      %23 = sbr.rel (0) target = $region5
    $region4: #{tpu_custom_call.1} parent=1 // pred_region
      %s25 = ssub.s32 256, 256
      %26 = vsyncadd [#allocation3], %s25
      %s27 = sshll.u32 [#allocation2], 4
      %s28 = int_to_ptr.vmem [resolvable:$true] %s27
      %33 = dma.hbm_to_vmem [thread:$0]  %s0, 256, %s28, [#allocation3], 128, 128, 8
    $region5: #{tpu_custom_call.1} parent=1 // pred_fallthru
      _
    // Predicated region
    $region6: #{tpu_custom_call.1} parent=1 // pred_check
      _
    $region7: #{tpu_custom_call.1} parent=1 // pred_check_branch
      %35 = sbr.rel (0) target = $region9
    $region8: #{tpu_custom_call.1} parent=1 // pred_region
      _
    $region9: #{tpu_custom_call.1} parent=1 // pred_fallthru
      _
    // Predicated region
    $region10: #{tpu_custom_call.1} parent=1 // pred_check
      _
    $region11: #{tpu_custom_call.1} parent=1 // pred_check_branch
      %37 = sbr.rel (0) target = $region13
    $region12: #{tpu_custom_call.1} parent=1 // pred_region
      _
    $region13: #{tpu_custom_call.1} parent=1 // pred_fallthru
      _
    // Predicated region
    $region14: #{tpu_custom_call.1} parent=1 // pred_check
      _
    $region15: #{tpu_custom_call.1} parent=1 // pred_check_branch
      %39 = sbr.rel (0) target = $region17
    $region16: #{tpu_custom_call.1} parent=1 // pred_region
      _
    $region17: #{tpu_custom_call.1} parent=1 // pred_fallthru
      _
    // Predicated region
    $region18: #{tpu_custom_call.1} parent=1 // pred_check
      _
    $region19: #{tpu_custom_call.1} parent=1 // pred_check_branch
      %41 = sbr.rel (0) target = $region21
    $region20: #{tpu_custom_call.1} parent=1 // pred_region
      _
    $region21: #{tpu_custom_call.1} parent=1 // pred_fallthru
      _
    // Predicated region
    $region22: #{tpu_custom_call.1} parent=1 // pred_check
      _
    $region23: #{tpu_custom_call.1} parent=1 // pred_check_branch
      %43 = sbr.rel (0) target = $region25
    $region24: #{tpu_custom_call.1} parent=1 // pred_region
      %s45 = ssub.s32 512, 512
      %46 = vsyncadd [#allocation6], %s45
      %s47 = sshll.u32 [#allocation5], 4
      %s48 = int_to_ptr.vmem [resolvable:$true] %s47
      %53 = dma.hbm_to_vmem [thread:$0]  %s5, 512, %s48, [#allocation6], 128, 128, 8
    $region25: #{tpu_custom_call.1} parent=1 // pred_fallthru
      _
    // Predicated region
    $region26: #{tpu_custom_call.1} parent=1 // pred_check
      _
    $region27: #{tpu_custom_call.1} parent=1 // pred_check_branch
      %55 = sbr.rel (0) target = $region29
    $region28: #{tpu_custom_call.1} parent=1 // pred_region
      _
    $region29: #{tpu_custom_call.1} parent=1 // pred_fallthru
      _
    // Predicated region
    $region30: #{tpu_custom_call.1} parent=1 // pred_check
      _
    $region31: #{tpu_custom_call.1} parent=1 // pred_check_branch
      %57 = sbr.rel (0) target = $region33
    $region32: #{tpu_custom_call.1} parent=1 // pred_region
      _
    $region33: #{tpu_custom_call.1} parent=1 // pred_fallthru
      _
    // Predicated region
    $region34: #{tpu_custom_call.1} parent=1 // pred_check
      _
    $region35: #{tpu_custom_call.1} parent=1 // pred_check_branch
      %59 = sbr.rel (0) target = $region37
    $region36: #{tpu_custom_call.1} parent=1 // pred_region
      %s61 = ssub.s32 512, 512
      %62 = vsyncadd [#allocation6], %s61
      %s63 = sshll.u32 [#allocation7], 4
      %s64 = int_to_ptr.vmem [resolvable:$true] %s63
      %69 = dma.hbm_to_vmem [thread:$0]  %s8, 512, %s64, [#allocation6], 128, 128, 8
    $region37: #{tpu_custom_call.1} parent=1 // pred_fallthru
      _
    // Predicated region
    $region38: #{tpu_custom_call.1} parent=1 // pred_check
      _
    $region39: #{tpu_custom_call.1} parent=1 // pred_check_branch
      %71 = sbr.rel (0) target = $region41
    $region40: #{tpu_custom_call.1} parent=1 // pred_region
      _
    $region41: #{tpu_custom_call.1} parent=1 // pred_fallthru
      _
    // Predicated region
    $region42: #{tpu_custom_call.1} parent=1 // pred_check
      _
    $region43: #{tpu_custom_call.1} parent=1 // pred_check_branch
      %73 = sbr.rel (0) target = $region45
    $region44: #{tpu_custom_call.1} parent=1 // pred_region
      _
    $region45: #{tpu_custom_call.1} parent=1 // pred_fallthru
      _
    // Predicated region
    $region46: #{tpu_custom_call.1} parent=1 // pred_check
      _
    $region47: #{tpu_custom_call.1} parent=1 // pred_check_branch
      %75 = sbr.rel (0) target = $region49
    $region48: #{tpu_custom_call.1} parent=1 // pred_region
      _
    $region49: #{tpu_custom_call.1} parent=1 // pred_fallthru
      _
    // Predicated region
    $region50: #{tpu_custom_call.1} parent=1 // pred_check
      _
    $region51: #{tpu_custom_call.1} parent=1 // pred_check_branch
      %77 = sbr.rel (0) target = $region53
    $region52: #{tpu_custom_call.1} parent=1 // pred_region
      _
    $region53: #{tpu_custom_call.1} parent=1 // pred_fallthru
      _
    // Predicated region
    $region54: #{tpu_custom_call.1} parent=1 // pred_check
      _
    $region55: #{tpu_custom_call.1} parent=1 // pred_check_branch
      %79 = sbr.rel (0) target = $region57
    $region56: #{tpu_custom_call.1} parent=1 // pred_region
      _
    $region57: #{tpu_custom_call.1} parent=1 // pred_fallthru
      _
    // Predicated region
    $region58: #{tpu_custom_call.1} parent=1 // pred_check
      _
    $region59: #{tpu_custom_call.1} parent=1 // pred_check_branch
      %81 = sbr.rel (0) target = $region61
    $region60: #{tpu_custom_call.1} parent=1 // pred_region
      %82 = dma.done [#allocation3], 256
    $region61: #{tpu_custom_call.1} parent=1 // pred_fallthru
      _
    // Predicated region
    $region62: #{tpu_custom_call.1} parent=1 // pred_check
      _
    $region63: #{tpu_custom_call.1} parent=1 // pred_check_branch
      %84 = sbr.rel (0) target = $region65
    $region64: #{tpu_custom_call.1} parent=1 // pred_region
      %85 = dma.done [#allocation6], 512
    $region65: #{tpu_custom_call.1} parent=1 // pred_fallthru
      _
    // Predicated region
    $region66: #{tpu_custom_call.1} parent=1 // pred_check
      _
    $region67: #{tpu_custom_call.1} parent=1 // pred_check_branch
      %87 = sbr.rel (0) target = $region69
    $region68: #{tpu_custom_call.1} parent=1 // pred_region
      %88 = dma.done [#allocation6], 512
    $region69: #{tpu_custom_call.1} parent=1 // pred_fallthru
      _
    %v89 = vld [vmem:[#allocation2] sm:$0xff]
    %v90 = vld [vmem:[#allocation2 + $0x8] sm:$0xff]
    %v91 = vld [vmem:[%s2] sm:$0xff]
    %v92 = vld [vmem:[%s2 + $0x8] sm:$0xff]
    %v93 = vld [vmem:[%s2 + $0x10] sm:$0xff]
    %v94 = vld [vmem:[%s2 + $0x18] sm:$0xff]
    %vm95 = vcmask 261120
    %v97 = vsel %vm95, %v89, 0
    %v100 = vsel %vm95, %v90, 0
    %102 = vmatprep.subr.mxu0 0.0
    %103 = vmatpush1.msra.mxu0 0.0
    %104 = vmatprep.subr.mxu0 0.0
    %105 = vmatpush1.msra.mxu0 0.0
    %106 = vmatprep.subr.mxu0 0.0
    %107 = vmatpush1.msra.mxu0 0.0
    %108 = vmatprep.subr.mxu0 0.0
    %109 = vmatpush1.msra.mxu0 0.0
    %110 = vmatprep.subr.mxu0 0.0
    %111 = vmatpush1.msra.mxu0 0.0
    %112 = vmatprep.subr.mxu0 0.0
    %113 = vmatpush1.msra.mxu0 0.0
    %114 = vmatprep.subr.mxu0 0.0
    %115 = vmatpush1.msra.mxu0 0.0
    %116 = vmatprep.subr.mxu0 0.0
    %117 = vmatpush1.msra.mxu0 0.0
    %118 = vmatprep.subr.mxu0 0.0
    %119 = vmatpush1.msra.mxu0 0.0
    %120 = vmatprep.subr.mxu0 0.0
    %121 = vmatpush1.msra.mxu0 0.0
    %122 = vmatprep.subr.mxu0 0.0
    %123 = vmatpush1.msra.mxu0 0.0
    %124 = vmatprep.subr.mxu0 0.0
    %125 = vmatpush1.msra.mxu0 0.0
    %126 = vmatprep.subr.mxu0 0.0
    %127 = vmatpush1.msra.mxu0 %v94
    %128 = vmatprep.subr.mxu0 0.0
    %129 = vmatpush1.msra.mxu0 %v93
    %130 = vmatprep.subr.mxu0 0.0
    %131 = vmatpush1.msra.mxu0 %v92
    %132 = vmatprep.subr.mxu0 0.0
    %133 = vmatpush1.msra.mxu0 %v91
    %134 = vmatprep.subr.mxu0 0.0
    %135 = vmatpush2.msra.mxu0 0.0
    %136 = vmatprep.subr.mxu0 0.0
    %137 = vmatpush2.msra.mxu0 0.0
    %138 = vmatprep.subr.mxu0 0.0
    %139 = vmatpush2.msra.mxu0 0.0
    %140 = vmatprep.subr.mxu0 0.0
    %141 = vmatpush2.msra.mxu0 0.0
    %142 = vmatprep.subr.mxu0 0.0
    %143 = vmatpush2.msra.mxu0 0.0
    %144 = vmatprep.subr.mxu0 0.0
    %145 = vmatpush2.msra.mxu0 0.0
    %146 = vmatprep.subr.mxu0 0.0
    %147 = vmatpush2.msra.mxu0 0.0
    %148 = vmatprep.subr.mxu0 0.0
    %149 = vmatpush2.msra.mxu0 0.0
    %150 = vmatprep.subr.mxu0 0.0
    %151 = vmatpush2.msra.mxu0 0.0
    %152 = vmatprep.subr.mxu0 0.0
    %153 = vmatpush2.msra.mxu0 0.0
    %154 = vmatprep.subr.mxu0 0.0
    %155 = vmatpush2.msra.mxu0 0.0
    %156 = vmatprep.subr.mxu0 0.0
    %157 = vmatpush2.msra.mxu0 0.0
    %158 = vmatprep.subr.mxu0 0.0
    %159 = vmatpush2.msra.mxu0 0.0
    %160 = vmatprep.subr.mxu0 0.0
    %161 = vmatpush2.msra.mxu0 0.0
    %162 = vmatprep.subr.mxu0 0.0
    %163 = vmatpush2.msra.mxu0 0.0
    %164 = vmatprep.subr.mxu0 0.0
    %165 = vmatpush2.msra.mxu0 0.0
    %166 = vmatprep.mubr.f32.mxu0 0.0
    %167 = vmatmul.mubr.f32.gmra.mxu0 %v97
    %v168 = vpop.f32.mrf.mxu0
    %v169 = vadd.f32 0.0, %v168
    %v170 = vpop.f32.mrf.mxu0
    %171 = vmatprep.mubr.f32.mxu0 0.0
    %172 = vmatmul.mubr.f32.gmra.mxu0 %v100
    %v173 = vpop.f32.mrf.mxu0
    %v174 = vadd.f32 0.0, %v173
    %v175 = vpop.f32.mrf.mxu0
    %176 = vdwg.mxu0
    %v177 = vld [vmem:[%s3] sm:$0xff]
    %v178 = vld [vmem:[%s3 + $0x8] sm:$0xff]
    %v179 = vld [vmem:[%s3 + $0x10] sm:$0xff]
    %v180 = vld [vmem:[%s3 + $0x18] sm:$0xff]
    %181 = vmatprep.subr.mxu0 0.0
    %182 = vmatpush1.msra.mxu0 0.0
    %183 = vmatprep.subr.mxu0 0.0
    %184 = vmatpush1.msra.mxu0 0.0
    %185 = vmatprep.subr.mxu0 0.0
    %186 = vmatpush1.msra.mxu0 0.0
    %187 = vmatprep.subr.mxu0 0.0
    %188 = vmatpush1.msra.mxu0 0.0
    %189 = vmatprep.subr.mxu0 0.0
    %190 = vmatpush1.msra.mxu0 0.0
    %191 = vmatprep.subr.mxu0 0.0
    %192 = vmatpush1.msra.mxu0 0.0
    %193 = vmatprep.subr.mxu0 0.0
    %194 = vmatpush1.msra.mxu0 0.0
    %195 = vmatprep.subr.mxu0 0.0
    %196 = vmatpush1.msra.mxu0 0.0
    %197 = vmatprep.subr.mxu0 0.0
    %198 = vmatpush1.msra.mxu0 0.0
    %199 = vmatprep.subr.mxu0 0.0
    %200 = vmatpush1.msra.mxu0 0.0
    %201 = vmatprep.subr.mxu0 0.0
    %202 = vmatpush1.msra.mxu0 0.0
    %203 = vmatprep.subr.mxu0 0.0
    %204 = vmatpush1.msra.mxu0 0.0
    %205 = vmatprep.subr.mxu0 0.0
    %206 = vmatpush1.msra.mxu0 %v180
    %207 = vmatprep.subr.mxu0 0.0
    %208 = vmatpush1.msra.mxu0 %v179
    %209 = vmatprep.subr.mxu0 0.0
    %210 = vmatpush1.msra.mxu0 %v178
    %211 = vmatprep.subr.mxu0 0.0
    %212 = vmatpush1.msra.mxu0 %v177
    %213 = vmatprep.subr.mxu0 0.0
    %214 = vmatpush2.msra.mxu0 0.0
    %215 = vmatprep.subr.mxu0 0.0
    %216 = vmatpush2.msra.mxu0 0.0
    %217 = vmatprep.subr.mxu0 0.0
    %218 = vmatpush2.msra.mxu0 0.0
    %219 = vmatprep.subr.mxu0 0.0
    %220 = vmatpush2.msra.mxu0 0.0
    %221 = vmatprep.subr.mxu0 0.0
    %222 = vmatpush2.msra.mxu0 0.0
    %223 = vmatprep.subr.mxu0 0.0
    %224 = vmatpush2.msra.mxu0 0.0
    %225 = vmatprep.subr.mxu0 0.0
    %226 = vmatpush2.msra.mxu0 0.0
    %227 = vmatprep.subr.mxu0 0.0
    %228 = vmatpush2.msra.mxu0 0.0
    %229 = vmatprep.subr.mxu0 0.0
    %230 = vmatpush2.msra.mxu0 0.0
    %231 = vmatprep.subr.mxu0 0.0
    %232 = vmatpush2.msra.mxu0 0.0
    %233 = vmatprep.subr.mxu0 0.0
    %234 = vmatpush2.msra.mxu0 0.0
    %235 = vmatprep.subr.mxu0 0.0
    %236 = vmatpush2.msra.mxu0 0.0
    %237 = vmatprep.subr.mxu0 0.0
    %238 = vmatpush2.msra.mxu0 0.0
    %239 = vmatprep.subr.mxu0 0.0
    %240 = vmatpush2.msra.mxu0 0.0
    %241 = vmatprep.subr.mxu0 0.0
    %242 = vmatpush2.msra.mxu0 0.0
    %243 = vmatprep.subr.mxu0 0.0
    %244 = vmatpush2.msra.mxu0 0.0
    %245 = vmatprep.mubr.f32.mxu0 0.0
    %246 = vmatmul.mubr.f32.gmra.mxu0 %v97
    %v247 = vpop.f32.mrf.mxu0
    %v248 = vadd.f32 0.0, %v247
    %v249 = vpop.f32.mrf.mxu0
    %250 = vmatprep.mubr.f32.mxu0 0.0
    %251 = vmatmul.mubr.f32.gmra.mxu0 %v100
    %v252 = vpop.f32.mrf.mxu0
    %v253 = vadd.f32 0.0, %v252
    %v254 = vpop.f32.mrf.mxu0
    %255 = vdwg.mxu0
    %v256 = vld [vmem:[%s4] sm:$0xff]
    %v257 = vld [vmem:[%s4 + $0x8] sm:$0xff]
    %v258 = vld [vmem:[%s4 + $0x10] sm:$0xff]
    %v259 = vld [vmem:[%s4 + $0x18] sm:$0xff]
    %260 = vmatprep.subr.mxu0 0.0
    %261 = vmatpush1.msra.mxu0 0.0
    %262 = vmatprep.subr.mxu0 0.0
    %263 = vmatpush1.msra.mxu0 0.0
    %264 = vmatprep.subr.mxu0 0.0
    %265 = vmatpush1.msra.mxu0 0.0
    %266 = vmatprep.subr.mxu0 0.0
    %267 = vmatpush1.msra.mxu0 0.0
    %268 = vmatprep.subr.mxu0 0.0
    %269 = vmatpush1.msra.mxu0 0.0
    %270 = vmatprep.subr.mxu0 0.0
    %271 = vmatpush1.msra.mxu0 0.0
    %272 = vmatprep.subr.mxu0 0.0
    %273 = vmatpush1.msra.mxu0 0.0
    %274 = vmatprep.subr.mxu0 0.0
    %275 = vmatpush1.msra.mxu0 0.0
    %276 = vmatprep.subr.mxu0 0.0
    %277 = vmatpush1.msra.mxu0 0.0
    %278 = vmatprep.subr.mxu0 0.0
    %279 = vmatpush1.msra.mxu0 0.0
    %280 = vmatprep.subr.mxu0 0.0
    %281 = vmatpush1.msra.mxu0 0.0
    %282 = vmatprep.subr.mxu0 0.0
    %283 = vmatpush1.msra.mxu0 0.0
    %284 = vmatprep.subr.mxu0 0.0
    %285 = vmatpush1.msra.mxu0 %v259
    %286 = vmatprep.subr.mxu0 0.0
    %287 = vmatpush1.msra.mxu0 %v258
    %288 = vmatprep.subr.mxu0 0.0
    %289 = vmatpush1.msra.mxu0 %v257
    %290 = vmatprep.subr.mxu0 0.0
    %291 = vmatpush1.msra.mxu0 %v256
    %292 = vmatprep.subr.mxu0 0.0
    %293 = vmatpush2.msra.mxu0 0.0
    %294 = vmatprep.subr.mxu0 0.0
    %295 = vmatpush2.msra.mxu0 0.0
    %296 = vmatprep.subr.mxu0 0.0
    %297 = vmatpush2.msra.mxu0 0.0
    %298 = vmatprep.subr.mxu0 0.0
    %299 = vmatpush2.msra.mxu0 0.0
    %300 = vmatprep.subr.mxu0 0.0
    %301 = vmatpush2.msra.mxu0 0.0
    %302 = vmatprep.subr.mxu0 0.0
    %303 = vmatpush2.msra.mxu0 0.0
    %304 = vmatprep.subr.mxu0 0.0
    %305 = vmatpush2.msra.mxu0 0.0
    %306 = vmatprep.subr.mxu0 0.0
    %307 = vmatpush2.msra.mxu0 0.0
    %308 = vmatprep.subr.mxu0 0.0
    %309 = vmatpush2.msra.mxu0 0.0
    %310 = vmatprep.subr.mxu0 0.0
    %311 = vmatpush2.msra.mxu0 0.0
    %312 = vmatprep.subr.mxu0 0.0
    %313 = vmatpush2.msra.mxu0 0.0
    %314 = vmatprep.subr.mxu0 0.0
    %315 = vmatpush2.msra.mxu0 0.0
    %316 = vmatprep.subr.mxu0 0.0
    %317 = vmatpush2.msra.mxu0 0.0
    %318 = vmatprep.subr.mxu0 0.0
    %319 = vmatpush2.msra.mxu0 0.0
    %320 = vmatprep.subr.mxu0 0.0
    %321 = vmatpush2.msra.mxu0 0.0
    %322 = vmatprep.subr.mxu0 0.0
    %323 = vmatpush2.msra.mxu0 0.0
    %324 = vmatprep.mubr.f32.mxu0 0.0
    %325 = vmatmul.mubr.f32.gmra.mxu0 %v97
    %v326 = vpop.f32.mrf.mxu0
    %v327 = vadd.f32 0.0, %v326
    %v328 = vpop.f32.mrf.mxu0
    %329 = vmatprep.mubr.f32.mxu0 0.0
    %330 = vmatmul.mubr.f32.gmra.mxu0 %v100
    %v331 = vpop.f32.mrf.mxu0
    %v332 = vadd.f32 0.0, %v331
    %v333 = vpop.f32.mrf.mxu0
    %334 = vdwg.mxu0
    %v335 = vlaneseq
    %v336 = vand.u32 %v335, 127
    %v337 = vld [vmem:[%s1] sm:$0x3]
    %v339 = vunpack.c.l.s4 1966171168
    %v340 = vunpack.c.0.s8 %v339
    %v341 = vlaneseq
    %v342 = vshrl.u32 %v341, 7
    %v343 = vsub.s32 %v340, %v342
    %v344 = vrot.slane %v337, %v343
    %v345 = vcombine.high %v344, %v344
    %v347 = vunpack.c.l.s4 1966171168
    %v348 = vunpack.c.0.s8 %v347
    %v349 = vlaneseq
    %v350 = vshrl.u32 %v349, 7
    %v351 = vsub.s32 %v348, %v350
    %v352 = vrot.slane %v344, %v351
    %v354 = vunpack.c.l.s4 1966171168
    %v355 = vunpack.c.0.s8 %v354
    %v356 = vlaneseq
    %v357 = vshrl.u32 %v356, 7
    %v358 = vsub.s32 %v355, %v357
    %v359 = vrot.slane %v345, %v358
    %360 = vset.pattern.permute.xlu0 0
    %361 = vperm.xlu0 %360, %v352
    %v362 = vpop.permute.xlu0 %361
    %v363 = vlaneseq
    %v364 = vshrl.u32 %v363, 7
    %v365 = vsub.s32 0, %v364
    %v366 = vrot.slane %v362, %v365
    %367 = vset.pattern.permute.xlu0 0
    %368 = vperm.xlu0 %367, %v359
    %v369 = vpop.permute.xlu0 %368
    %v370 = vlaneseq
    %v371 = vshrl.u32 %v370, 7
    %v372 = vsub.s32 0, %v371
    %v373 = vrot.slane %v369, %v372
    %vm374 = vcmp.lt.s32.totalorder %v336, %v366
    %vm375 = vcmp.lt.s32.totalorder %v336, %v373
    %v376 = vld [vmem:[#allocation5] sm:$0xff]
    %v377 = vld [vmem:[#allocation5 + $0x8] sm:$0xff]
    %v378 = vld [vmem:[#allocation5 + $0x10] sm:$0xff]
    %v379 = vld [vmem:[#allocation5 + $0x18] sm:$0xff]
    %vm380 = vcmask 64512
    %v382 = vsel %vm380, %v169, 0
    %v385 = vsel %vm380, %v248, 0
    %387 = vmatprep.subr.mxu0 0.0
    %388 = vmatpush1.xpose.msra.mxu0 0.0
    %389 = vmatprep.subr.mxu0 0.0
    %390 = vmatpush1.xpose.msra.mxu0 0.0
    %391 = vmatprep.subr.mxu0 0.0
    %392 = vmatpush1.xpose.msra.mxu0 0.0
    %393 = vmatprep.subr.mxu0 0.0
    %394 = vmatpush1.xpose.msra.mxu0 0.0
    %395 = vmatprep.subr.mxu0 0.0
    %396 = vmatpush1.xpose.msra.mxu0 0.0
    %397 = vmatprep.subr.mxu0 0.0
    %398 = vmatpush1.xpose.msra.mxu0 0.0
    %399 = vmatprep.subr.mxu0 0.0
    %400 = vmatpush1.xpose.msra.mxu0 0.0
    %401 = vmatprep.subr.mxu0 0.0
    %402 = vmatpush1.xpose.msra.mxu0 0.0
    %403 = vmatprep.subr.mxu0 0.0
    %404 = vmatpush1.xpose.msra.mxu0 0.0
    %405 = vmatprep.subr.mxu0 0.0
    %406 = vmatpush1.xpose.msra.mxu0 0.0
    %407 = vmatprep.subr.mxu0 0.0
    %408 = vmatpush1.xpose.msra.mxu0 0.0
    %409 = vmatprep.subr.mxu0 0.0
    %410 = vmatpush1.xpose.msra.mxu0 0.0
    %411 = vmatprep.subr.mxu0 0.0
    %412 = vmatpush1.xpose.msra.mxu0 0.0
    %413 = vmatprep.subr.mxu0 0.0
    %414 = vmatpush1.xpose.msra.mxu0 0.0
    %415 = vmatprep.subr.mxu0 0.0
    %416 = vmatpush1.xpose.msra.mxu0 0.0
    %417 = vmatprep.subr.mxu0 0.0
    %418 = vmatpush1.xpose.msra.mxu0 %v385
    %419 = vmatprep.subr.mxu0 0.0
    %420 = vmatpush2.xpose.msra.mxu0 0.0
    %421 = vmatprep.subr.mxu0 0.0
    %422 = vmatpush2.xpose.msra.mxu0 0.0
    %423 = vmatprep.subr.mxu0 0.0
    %424 = vmatpush2.xpose.msra.mxu0 0.0
    %425 = vmatprep.subr.mxu0 0.0
    %426 = vmatpush2.xpose.msra.mxu0 0.0
    %427 = vmatprep.subr.mxu0 0.0
    %428 = vmatpush2.xpose.msra.mxu0 0.0
    %429 = vmatprep.subr.mxu0 0.0
    %430 = vmatpush2.xpose.msra.mxu0 0.0
    %431 = vmatprep.subr.mxu0 0.0
    %432 = vmatpush2.xpose.msra.mxu0 0.0
    %433 = vmatprep.subr.mxu0 0.0
    %434 = vmatpush2.xpose.msra.mxu0 0.0
    %435 = vmatprep.subr.mxu0 0.0
    %436 = vmatpush2.xpose.msra.mxu0 0.0
    %437 = vmatprep.subr.mxu0 0.0
    %438 = vmatpush2.xpose.msra.mxu0 0.0
    %439 = vmatprep.subr.mxu0 0.0
    %440 = vmatpush2.xpose.msra.mxu0 0.0
    %441 = vmatprep.subr.mxu0 0.0
    %442 = vmatpush2.xpose.msra.mxu0 0.0
    %443 = vmatprep.subr.mxu0 0.0
    %444 = vmatpush2.xpose.msra.mxu0 0.0
    %445 = vmatprep.subr.mxu0 0.0
    %446 = vmatpush2.xpose.msra.mxu0 0.0
    %447 = vmatprep.subr.mxu0 0.0
    %448 = vmatpush2.xpose.msra.mxu0 0.0
    %449 = vmatprep.subr.mxu0 0.0
    %450 = vmatpush2.xpose.msra.mxu0 0.0
    %451 = vmatprep.mubr.f32.mxu0 0.0
    %452 = vmatmul.mubr.f32.gmra.mxu0 %v382
    %v453 = vpop.f32.mrf.mxu0
    %v454 = vadd.f32 0.0, %v453
    %v455 = vpop.f32.mrf.mxu0
    %456 = vdwg.mxu0
    %v458 = vsel %vm380, %v174, 0
    %v461 = vsel %vm380, %v253, 0
    %463 = vmatprep.subr.mxu0 0.0
    %464 = vmatpush1.xpose.msra.mxu0 0.0
    %465 = vmatprep.subr.mxu0 0.0
    %466 = vmatpush1.xpose.msra.mxu0 0.0
    %467 = vmatprep.subr.mxu0 0.0
    %468 = vmatpush1.xpose.msra.mxu0 0.0
    %469 = vmatprep.subr.mxu0 0.0
    %470 = vmatpush1.xpose.msra.mxu0 0.0
    %471 = vmatprep.subr.mxu0 0.0
    %472 = vmatpush1.xpose.msra.mxu0 0.0
    %473 = vmatprep.subr.mxu0 0.0
    %474 = vmatpush1.xpose.msra.mxu0 0.0
    %475 = vmatprep.subr.mxu0 0.0
    %476 = vmatpush1.xpose.msra.mxu0 0.0
    %477 = vmatprep.subr.mxu0 0.0
    %478 = vmatpush1.xpose.msra.mxu0 0.0
    %479 = vmatprep.subr.mxu0 0.0
    %480 = vmatpush1.xpose.msra.mxu0 0.0
    %481 = vmatprep.subr.mxu0 0.0
    %482 = vmatpush1.xpose.msra.mxu0 0.0
    %483 = vmatprep.subr.mxu0 0.0
    %484 = vmatpush1.xpose.msra.mxu0 0.0
    %485 = vmatprep.subr.mxu0 0.0
    %486 = vmatpush1.xpose.msra.mxu0 0.0
    %487 = vmatprep.subr.mxu0 0.0
    %488 = vmatpush1.xpose.msra.mxu0 0.0
    %489 = vmatprep.subr.mxu0 0.0
    %490 = vmatpush1.xpose.msra.mxu0 0.0
    %491 = vmatprep.subr.mxu0 0.0
    %492 = vmatpush1.xpose.msra.mxu0 0.0
    %493 = vmatprep.subr.mxu0 0.0
    %494 = vmatpush1.xpose.msra.mxu0 %v461
    %495 = vmatprep.subr.mxu0 0.0
    %496 = vmatpush2.xpose.msra.mxu0 0.0
    %497 = vmatprep.subr.mxu0 0.0
    %498 = vmatpush2.xpose.msra.mxu0 0.0
    %499 = vmatprep.subr.mxu0 0.0
    %500 = vmatpush2.xpose.msra.mxu0 0.0
    %501 = vmatprep.subr.mxu0 0.0
    %502 = vmatpush2.xpose.msra.mxu0 0.0
    %503 = vmatprep.subr.mxu0 0.0
    %504 = vmatpush2.xpose.msra.mxu0 0.0
    %505 = vmatprep.subr.mxu0 0.0
    %506 = vmatpush2.xpose.msra.mxu0 0.0
    %507 = vmatprep.subr.mxu0 0.0
    %508 = vmatpush2.xpose.msra.mxu0 0.0
    %509 = vmatprep.subr.mxu0 0.0
    %510 = vmatpush2.xpose.msra.mxu0 0.0
    %511 = vmatprep.subr.mxu0 0.0
    %512 = vmatpush2.xpose.msra.mxu0 0.0
    %513 = vmatprep.subr.mxu0 0.0
    %514 = vmatpush2.xpose.msra.mxu0 0.0
    %515 = vmatprep.subr.mxu0 0.0
    %516 = vmatpush2.xpose.msra.mxu0 0.0
    %517 = vmatprep.subr.mxu0 0.0
    %518 = vmatpush2.xpose.msra.mxu0 0.0
    %519 = vmatprep.subr.mxu0 0.0
    %520 = vmatpush2.xpose.msra.mxu0 0.0
    %521 = vmatprep.subr.mxu0 0.0
    %522 = vmatpush2.xpose.msra.mxu0 0.0
    %523 = vmatprep.subr.mxu0 0.0
    %524 = vmatpush2.xpose.msra.mxu0 0.0
    %525 = vmatprep.subr.mxu0 0.0
    %526 = vmatpush2.xpose.msra.mxu0 0.0
    %527 = vmatprep.mubr.f32.mxu0 0.0
    %528 = vmatmul.mubr.f32.gmra.mxu0 %v458
    %v529 = vpop.f32.mrf.mxu0
    %v530 = vadd.f32 0.0, %v529
    %v531 = vpop.f32.mrf.mxu0
    %532 = vdwg.mxu0
    %v533 = vmul.f32 %v454, 0.35355338
    %v534 = vmul.f32 %v530, 0.35355338
    %v535 = vsel %vm374, 1, 0
    %v536 = vsel %vm375, 1, 0
    %vm537 = vcmp.eq.s32.totalorder %v535, 1
    %vm538 = vcmp.eq.s32.totalorder %v536, 1
    %v539 = vsel %vm537, %v533, -1000000.0
    %v540 = vsel %vm538, %v534, -1000000.0
    %v541 = vsel %vm380, %v539, -inf
    %542 = vmax.xlane.f32.xlu0 %v541
    %v543 = vpop.xlane.xlu0 %542
    %v544 = vsel %vm380, %v540, -inf
    %545 = vmax.xlane.f32.xlu0 %v544
    %v546 = vpop.xlane.xlu0 %545
    %v547 = vsub.f32 %v539, %v543
    %v548 = vsub.f32 %v540, %v546
    %v549 = vmul.f32 %v547, 1.442695
    %v550 = vpow.pop %v549
    %v551 = vmul.f32 %v548, 1.442695
    %v552 = vpow.pop %v551
    %v553 = vsel %vm380, %v550, 0.0
    %554 = vadd.xlane.f32.xlu0 %v553
    %v555 = vpop.xlane.xlu0 %554
    %v556 = vsel %vm380, %v552, 0.0
    %557 = vadd.xlane.f32.xlu0 %v556
    %v558 = vpop.xlane.xlu0 %557
    %v559 = vrcp.pop %v555
    %v560 = vrcp.pop %v558
    %v561 = vmul.f32 %v550, %v559
    %v562 = vmul.f32 %v552, %v560
    %v564 = vsel %vm380, %v561, 0
    %566 = vmatprep.subr.mxu0 0.0
    %567 = vmatpush1.msra.mxu0 0.0
    %568 = vmatprep.subr.mxu0 0.0
    %569 = vmatpush1.msra.mxu0 0.0
    %570 = vmatprep.subr.mxu0 0.0
    %571 = vmatpush1.msra.mxu0 0.0
    %572 = vmatprep.subr.mxu0 0.0
    %573 = vmatpush1.msra.mxu0 0.0
    %574 = vmatprep.subr.mxu0 0.0
    %575 = vmatpush1.msra.mxu0 0.0
    %576 = vmatprep.subr.mxu0 0.0
    %577 = vmatpush1.msra.mxu0 0.0
    %578 = vmatprep.subr.mxu0 0.0
    %579 = vmatpush1.msra.mxu0 0.0
    %580 = vmatprep.subr.mxu0 0.0
    %581 = vmatpush1.msra.mxu0 0.0
    %582 = vmatprep.subr.mxu0 0.0
    %583 = vmatpush1.msra.mxu0 0.0
    %584 = vmatprep.subr.mxu0 0.0
    %585 = vmatpush1.msra.mxu0 0.0
    %586 = vmatprep.subr.mxu0 0.0
    %587 = vmatpush1.msra.mxu0 0.0
    %588 = vmatprep.subr.mxu0 0.0
    %589 = vmatpush1.msra.mxu0 0.0
    %590 = vmatprep.subr.mxu0 0.0
    %591 = vmatpush1.msra.mxu0 0.0
    %592 = vmatprep.subr.mxu0 0.0
    %593 = vmatpush1.msra.mxu0 0.0
    %594 = vmatprep.subr.mxu0 0.0
    %595 = vmatpush1.msra.mxu0 0.0
    %596 = vmatprep.subr.mxu0 0.0
    %597 = vmatpush1.msra.mxu0 %v327
    %598 = vmatprep.subr.mxu0 0.0
    %599 = vmatpush2.msra.mxu0 0.0
    %600 = vmatprep.subr.mxu0 0.0
    %601 = vmatpush2.msra.mxu0 0.0
    %602 = vmatprep.subr.mxu0 0.0
    %603 = vmatpush2.msra.mxu0 0.0
    %604 = vmatprep.subr.mxu0 0.0
    %605 = vmatpush2.msra.mxu0 0.0
    %606 = vmatprep.subr.mxu0 0.0
    %607 = vmatpush2.msra.mxu0 0.0
    %608 = vmatprep.subr.mxu0 0.0
    %609 = vmatpush2.msra.mxu0 0.0
    %610 = vmatprep.subr.mxu0 0.0
    %611 = vmatpush2.msra.mxu0 0.0
    %612 = vmatprep.subr.mxu0 0.0
    %613 = vmatpush2.msra.mxu0 0.0
    %614 = vmatprep.subr.mxu0 0.0
    %615 = vmatpush2.msra.mxu0 0.0
    %616 = vmatprep.subr.mxu0 0.0
    %617 = vmatpush2.msra.mxu0 0.0
    %618 = vmatprep.subr.mxu0 0.0
    %619 = vmatpush2.msra.mxu0 0.0
    %620 = vmatprep.subr.mxu0 0.0
    %621 = vmatpush2.msra.mxu0 0.0
    %622 = vmatprep.subr.mxu0 0.0
    %623 = vmatpush2.msra.mxu0 0.0
    %624 = vmatprep.subr.mxu0 0.0
    %625 = vmatpush2.msra.mxu0 0.0
    %626 = vmatprep.subr.mxu0 0.0
    %627 = vmatpush2.msra.mxu0 0.0
    %628 = vmatprep.subr.mxu0 0.0
    %629 = vmatpush2.msra.mxu0 0.0
    %630 = vmatprep.mubr.f32.mxu0 0.0
    %631 = vmatmul.mubr.f32.gmra.mxu0 %v564
    %v632 = vpop.f32.mrf.mxu0
    %v633 = vadd.f32 0.0, %v632
    %v634 = vpop.f32.mrf.mxu0
    %635 = vdwg.mxu0
    %v637 = vsel %vm380, %v562, 0
    %639 = vmatprep.subr.mxu0 0.0
    %640 = vmatpush1.msra.mxu0 0.0
    %641 = vmatprep.subr.mxu0 0.0
    %642 = vmatpush1.msra.mxu0 0.0
    %643 = vmatprep.subr.mxu0 0.0
    %644 = vmatpush1.msra.mxu0 0.0
    %645 = vmatprep.subr.mxu0 0.0
    %646 = vmatpush1.msra.mxu0 0.0
    %647 = vmatprep.subr.mxu0 0.0
    %648 = vmatpush1.msra.mxu0 0.0
    %649 = vmatprep.subr.mxu0 0.0
    %650 = vmatpush1.msra.mxu0 0.0
    %651 = vmatprep.subr.mxu0 0.0
    %652 = vmatpush1.msra.mxu0 0.0
    %653 = vmatprep.subr.mxu0 0.0
    %654 = vmatpush1.msra.mxu0 0.0
    %655 = vmatprep.subr.mxu0 0.0
    %656 = vmatpush1.msra.mxu0 0.0
    %657 = vmatprep.subr.mxu0 0.0
    %658 = vmatpush1.msra.mxu0 0.0
    %659 = vmatprep.subr.mxu0 0.0
    %660 = vmatpush1.msra.mxu0 0.0
    %661 = vmatprep.subr.mxu0 0.0
    %662 = vmatpush1.msra.mxu0 0.0
    %663 = vmatprep.subr.mxu0 0.0
    %664 = vmatpush1.msra.mxu0 0.0
    %665 = vmatprep.subr.mxu0 0.0
    %666 = vmatpush1.msra.mxu0 0.0
    %667 = vmatprep.subr.mxu0 0.0
    %668 = vmatpush1.msra.mxu0 0.0
    %669 = vmatprep.subr.mxu0 0.0
    %670 = vmatpush1.msra.mxu0 %v332
    %671 = vmatprep.subr.mxu0 0.0
    %672 = vmatpush2.msra.mxu0 0.0
    %673 = vmatprep.subr.mxu0 0.0
    %674 = vmatpush2.msra.mxu0 0.0
    %675 = vmatprep.subr.mxu0 0.0
    %676 = vmatpush2.msra.mxu0 0.0
    %677 = vmatprep.subr.mxu0 0.0
    %678 = vmatpush2.msra.mxu0 0.0
    %679 = vmatprep.subr.mxu0 0.0
    %680 = vmatpush2.msra.mxu0 0.0
    %681 = vmatprep.subr.mxu0 0.0
    %682 = vmatpush2.msra.mxu0 0.0
    %683 = vmatprep.subr.mxu0 0.0
    %684 = vmatpush2.msra.mxu0 0.0
    %685 = vmatprep.subr.mxu0 0.0
    %686 = vmatpush2.msra.mxu0 0.0
    %687 = vmatprep.subr.mxu0 0.0
    %688 = vmatpush2.msra.mxu0 0.0
    %689 = vmatprep.subr.mxu0 0.0
    %690 = vmatpush2.msra.mxu0 0.0
    %691 = vmatprep.subr.mxu0 0.0
    %692 = vmatpush2.msra.mxu0 0.0
    %693 = vmatprep.subr.mxu0 0.0
    %694 = vmatpush2.msra.mxu0 0.0
    %695 = vmatprep.subr.mxu0 0.0
    %696 = vmatpush2.msra.mxu0 0.0
    %697 = vmatprep.subr.mxu0 0.0
    %698 = vmatpush2.msra.mxu0 0.0
    %699 = vmatprep.subr.mxu0 0.0
    %700 = vmatpush2.msra.mxu0 0.0
    %701 = vmatprep.subr.mxu0 0.0
    %702 = vmatpush2.msra.mxu0 0.0
    %703 = vmatprep.mubr.f32.mxu0 0.0
    %704 = vmatmul.mubr.f32.gmra.mxu0 %v637
    %v705 = vpop.f32.mrf.mxu0
    %v706 = vadd.f32 0.0, %v705
    %v707 = vpop.f32.mrf.mxu0
    %708 = vdwg.mxu0
    %709 = vrot.lane.b32.xlu0 %v169, 120
    %v710 = vpop.permute.xlu0 %709
    %711 = vrot.lane.b32.xlu0 %v248, 120
    %v712 = vpop.permute.xlu0 %711
    %v713 = vsel %vm380, %v710, 0
    %v715 = vsel %vm380, %v712, 0
    %717 = vmatprep.subr.mxu0 0.0
    %718 = vmatpush1.xpose.msra.mxu0 0.0
    %719 = vmatprep.subr.mxu0 0.0
    %720 = vmatpush1.xpose.msra.mxu0 0.0
    %721 = vmatprep.subr.mxu0 0.0
    %722 = vmatpush1.xpose.msra.mxu0 0.0
    %723 = vmatprep.subr.mxu0 0.0
    %724 = vmatpush1.xpose.msra.mxu0 0.0
    %725 = vmatprep.subr.mxu0 0.0
    %726 = vmatpush1.xpose.msra.mxu0 0.0
    %727 = vmatprep.subr.mxu0 0.0
    %728 = vmatpush1.xpose.msra.mxu0 0.0
    %729 = vmatprep.subr.mxu0 0.0
    %730 = vmatpush1.xpose.msra.mxu0 0.0
    %731 = vmatprep.subr.mxu0 0.0
    %732 = vmatpush1.xpose.msra.mxu0 0.0
    %733 = vmatprep.subr.mxu0 0.0
    %734 = vmatpush1.xpose.msra.mxu0 0.0
    %735 = vmatprep.subr.mxu0 0.0
    %736 = vmatpush1.xpose.msra.mxu0 0.0
    %737 = vmatprep.subr.mxu0 0.0
    %738 = vmatpush1.xpose.msra.mxu0 0.0
    %739 = vmatprep.subr.mxu0 0.0
    %740 = vmatpush1.xpose.msra.mxu0 0.0
    %741 = vmatprep.subr.mxu0 0.0
    %742 = vmatpush1.xpose.msra.mxu0 0.0
    %743 = vmatprep.subr.mxu0 0.0
    %744 = vmatpush1.xpose.msra.mxu0 0.0
    %745 = vmatprep.subr.mxu0 0.0
    %746 = vmatpush1.xpose.msra.mxu0 0.0
    %747 = vmatprep.subr.mxu0 0.0
    %748 = vmatpush1.xpose.msra.mxu0 %v715
    %749 = vmatprep.subr.mxu0 0.0
    %750 = vmatpush2.xpose.msra.mxu0 0.0
    %751 = vmatprep.subr.mxu0 0.0
    %752 = vmatpush2.xpose.msra.mxu0 0.0
    %753 = vmatprep.subr.mxu0 0.0
    %754 = vmatpush2.xpose.msra.mxu0 0.0
    %755 = vmatprep.subr.mxu0 0.0
    %756 = vmatpush2.xpose.msra.mxu0 0.0
    %757 = vmatprep.subr.mxu0 0.0
    %758 = vmatpush2.xpose.msra.mxu0 0.0
    %759 = vmatprep.subr.mxu0 0.0
    %760 = vmatpush2.xpose.msra.mxu0 0.0
    %761 = vmatprep.subr.mxu0 0.0
    %762 = vmatpush2.xpose.msra.mxu0 0.0
    %763 = vmatprep.subr.mxu0 0.0
    %764 = vmatpush2.xpose.msra.mxu0 0.0
    %765 = vmatprep.subr.mxu0 0.0
    %766 = vmatpush2.xpose.msra.mxu0 0.0
    %767 = vmatprep.subr.mxu0 0.0
    %768 = vmatpush2.xpose.msra.mxu0 0.0
    %769 = vmatprep.subr.mxu0 0.0
    %770 = vmatpush2.xpose.msra.mxu0 0.0
    %771 = vmatprep.subr.mxu0 0.0
    %772 = vmatpush2.xpose.msra.mxu0 0.0
    %773 = vmatprep.subr.mxu0 0.0
    %774 = vmatpush2.xpose.msra.mxu0 0.0
    %775 = vmatprep.subr.mxu0 0.0
    %776 = vmatpush2.xpose.msra.mxu0 0.0
    %777 = vmatprep.subr.mxu0 0.0
    %778 = vmatpush2.xpose.msra.mxu0 0.0
    %779 = vmatprep.subr.mxu0 0.0
    %780 = vmatpush2.xpose.msra.mxu0 0.0
    %781 = vmatprep.mubr.f32.mxu0 0.0
    %782 = vmatmul.mubr.f32.gmra.mxu0 %v713
    %v783 = vpop.f32.mrf.mxu0
    %v784 = vadd.f32 0.0, %v783
    %v785 = vpop.f32.mrf.mxu0
    %786 = vdwg.mxu0
    %787 = vrot.lane.b32.xlu0 %v174, 120
    %v788 = vpop.permute.xlu0 %787
    %789 = vrot.lane.b32.xlu0 %v253, 120
    %v790 = vpop.permute.xlu0 %789
    %v791 = vsel %vm380, %v788, 0
    %v793 = vsel %vm380, %v790, 0
    %795 = vmatprep.subr.mxu0 0.0
    %796 = vmatpush1.xpose.msra.mxu0 0.0
    %797 = vmatprep.subr.mxu0 0.0
    %798 = vmatpush1.xpose.msra.mxu0 0.0
    %799 = vmatprep.subr.mxu0 0.0
    %800 = vmatpush1.xpose.msra.mxu0 0.0
    %801 = vmatprep.subr.mxu0 0.0
    %802 = vmatpush1.xpose.msra.mxu0 0.0
    %803 = vmatprep.subr.mxu0 0.0
    %804 = vmatpush1.xpose.msra.mxu0 0.0
    %805 = vmatprep.subr.mxu0 0.0
    %806 = vmatpush1.xpose.msra.mxu0 0.0
    %807 = vmatprep.subr.mxu0 0.0
    %808 = vmatpush1.xpose.msra.mxu0 0.0
    %809 = vmatprep.subr.mxu0 0.0
    %810 = vmatpush1.xpose.msra.mxu0 0.0
    %811 = vmatprep.subr.mxu0 0.0
    %812 = vmatpush1.xpose.msra.mxu0 0.0
    %813 = vmatprep.subr.mxu0 0.0
    %814 = vmatpush1.xpose.msra.mxu0 0.0
    %815 = vmatprep.subr.mxu0 0.0
    %816 = vmatpush1.xpose.msra.mxu0 0.0
    %817 = vmatprep.subr.mxu0 0.0
    %818 = vmatpush1.xpose.msra.mxu0 0.0
    %819 = vmatprep.subr.mxu0 0.0
    %820 = vmatpush1.xpose.msra.mxu0 0.0
    %821 = vmatprep.subr.mxu0 0.0
    %822 = vmatpush1.xpose.msra.mxu0 0.0
    %823 = vmatprep.subr.mxu0 0.0
    %824 = vmatpush1.xpose.msra.mxu0 0.0
    %825 = vmatprep.subr.mxu0 0.0
    %826 = vmatpush1.xpose.msra.mxu0 %v793
    %827 = vmatprep.subr.mxu0 0.0
    %828 = vmatpush2.xpose.msra.mxu0 0.0
    %829 = vmatprep.subr.mxu0 0.0
    %830 = vmatpush2.xpose.msra.mxu0 0.0
    %831 = vmatprep.subr.mxu0 0.0
    %832 = vmatpush2.xpose.msra.mxu0 0.0
    %833 = vmatprep.subr.mxu0 0.0
    %834 = vmatpush2.xpose.msra.mxu0 0.0
    %835 = vmatprep.subr.mxu0 0.0
    %836 = vmatpush2.xpose.msra.mxu0 0.0
    %837 = vmatprep.subr.mxu0 0.0
    %838 = vmatpush2.xpose.msra.mxu0 0.0
    %839 = vmatprep.subr.mxu0 0.0
    %840 = vmatpush2.xpose.msra.mxu0 0.0
    %841 = vmatprep.subr.mxu0 0.0
    %842 = vmatpush2.xpose.msra.mxu0 0.0
    %843 = vmatprep.subr.mxu0 0.0
    %844 = vmatpush2.xpose.msra.mxu0 0.0
    %845 = vmatprep.subr.mxu0 0.0
    %846 = vmatpush2.xpose.msra.mxu0 0.0
    %847 = vmatprep.subr.mxu0 0.0
    %848 = vmatpush2.xpose.msra.mxu0 0.0
    %849 = vmatprep.subr.mxu0 0.0
    %850 = vmatpush2.xpose.msra.mxu0 0.0
    %851 = vmatprep.subr.mxu0 0.0
    %852 = vmatpush2.xpose.msra.mxu0 0.0
    %853 = vmatprep.subr.mxu0 0.0
    %854 = vmatpush2.xpose.msra.mxu0 0.0
    %855 = vmatprep.subr.mxu0 0.0
    %856 = vmatpush2.xpose.msra.mxu0 0.0
    %857 = vmatprep.subr.mxu0 0.0
    %858 = vmatpush2.xpose.msra.mxu0 0.0
    %859 = vmatprep.mubr.f32.mxu0 0.0
    %860 = vmatmul.mubr.f32.gmra.mxu0 %v791
    %v861 = vpop.f32.mrf.mxu0
    %v862 = vadd.f32 0.0, %v861
    %v863 = vpop.f32.mrf.mxu0
    %864 = vdwg.mxu0
    %v865 = vmul.f32 %v784, 0.35355338
    %v866 = vmul.f32 %v862, 0.35355338
    %v867 = vsel %vm537, %v865, -1000000.0
    %v868 = vsel %vm538, %v866, -1000000.0
    %v869 = vsel %vm380, %v867, -inf
    %870 = vmax.xlane.f32.xlu0 %v869
    %v871 = vpop.xlane.xlu0 %870
    %v872 = vsel %vm380, %v868, -inf
    %873 = vmax.xlane.f32.xlu0 %v872
    %v874 = vpop.xlane.xlu0 %873
    %v875 = vsub.f32 %v867, %v871
    %v876 = vsub.f32 %v868, %v874
    %v877 = vmul.f32 %v875, 1.442695
    %v878 = vpow.pop %v877
    %v879 = vmul.f32 %v876, 1.442695
    %v880 = vpow.pop %v879
    %v881 = vsel %vm380, %v878, 0.0
    %882 = vadd.xlane.f32.xlu0 %v881
    %v883 = vpop.xlane.xlu0 %882
    %v884 = vsel %vm380, %v880, 0.0
    %885 = vadd.xlane.f32.xlu0 %v884
    %v886 = vpop.xlane.xlu0 %885
    %v887 = vrcp.pop %v883
    %v888 = vrcp.pop %v886
    %v889 = vmul.f32 %v878, %v887
    %v890 = vmul.f32 %v880, %v888
    %892 = vrot.lane.b32.xlu0 %v327, 120
    %v893 = vpop.permute.xlu0 %892
    %v896 = vsel %vm380, %v889, 0
    %898 = vmatprep.subr.mxu0 0.0
    %899 = vmatpush1.msra.mxu0 0.0
    %900 = vmatprep.subr.mxu0 0.0
    %901 = vmatpush1.msra.mxu0 0.0
    %902 = vmatprep.subr.mxu0 0.0
    %903 = vmatpush1.msra.mxu0 0.0
    %904 = vmatprep.subr.mxu0 0.0
    %905 = vmatpush1.msra.mxu0 0.0
    %906 = vmatprep.subr.mxu0 0.0
    %907 = vmatpush1.msra.mxu0 0.0
    %908 = vmatprep.subr.mxu0 0.0
    %909 = vmatpush1.msra.mxu0 0.0
    %910 = vmatprep.subr.mxu0 0.0
    %911 = vmatpush1.msra.mxu0 0.0
    %912 = vmatprep.subr.mxu0 0.0
    %913 = vmatpush1.msra.mxu0 0.0
    %914 = vmatprep.subr.mxu0 0.0
    %915 = vmatpush1.msra.mxu0 0.0
    %916 = vmatprep.subr.mxu0 0.0
    %917 = vmatpush1.msra.mxu0 0.0
    %918 = vmatprep.subr.mxu0 0.0
    %919 = vmatpush1.msra.mxu0 0.0
    %920 = vmatprep.subr.mxu0 0.0
    %921 = vmatpush1.msra.mxu0 0.0
    %922 = vmatprep.subr.mxu0 0.0
    %923 = vmatpush1.msra.mxu0 0.0
    %924 = vmatprep.subr.mxu0 0.0
    %925 = vmatpush1.msra.mxu0 0.0
    %926 = vmatprep.subr.mxu0 0.0
    %927 = vmatpush1.msra.mxu0 0.0
    %928 = vmatprep.subr.mxu0 0.0
    %929 = vmatpush1.msra.mxu0 %v893
    %930 = vmatprep.subr.mxu0 0.0
    %931 = vmatpush2.msra.mxu0 0.0
    %932 = vmatprep.subr.mxu0 0.0
    %933 = vmatpush2.msra.mxu0 0.0
    %934 = vmatprep.subr.mxu0 0.0
    %935 = vmatpush2.msra.mxu0 0.0
    %936 = vmatprep.subr.mxu0 0.0
    %937 = vmatpush2.msra.mxu0 0.0
    %938 = vmatprep.subr.mxu0 0.0
    %939 = vmatpush2.msra.mxu0 0.0
    %940 = vmatprep.subr.mxu0 0.0
    %941 = vmatpush2.msra.mxu0 0.0
    %942 = vmatprep.subr.mxu0 0.0
    %943 = vmatpush2.msra.mxu0 0.0
    %944 = vmatprep.subr.mxu0 0.0
    %945 = vmatpush2.msra.mxu0 0.0
    %946 = vmatprep.subr.mxu0 0.0
    %947 = vmatpush2.msra.mxu0 0.0
    %948 = vmatprep.subr.mxu0 0.0
    %949 = vmatpush2.msra.mxu0 0.0
    %950 = vmatprep.subr.mxu0 0.0
    %951 = vmatpush2.msra.mxu0 0.0
    %952 = vmatprep.subr.mxu0 0.0
    %953 = vmatpush2.msra.mxu0 0.0
    %954 = vmatprep.subr.mxu0 0.0
    %955 = vmatpush2.msra.mxu0 0.0
    %956 = vmatprep.subr.mxu0 0.0
    %957 = vmatpush2.msra.mxu0 0.0
    %958 = vmatprep.subr.mxu0 0.0
    %959 = vmatpush2.msra.mxu0 0.0
    %960 = vmatprep.subr.mxu0 0.0
    %961 = vmatpush2.msra.mxu0 0.0
    %962 = vmatprep.mubr.f32.mxu0 0.0
    %963 = vmatmul.mubr.f32.gmra.mxu0 %v896
    %v964 = vpop.f32.mrf.mxu0
    %v965 = vadd.f32 0.0, %v964
    %v966 = vpop.f32.mrf.mxu0
    %967 = vdwg.mxu0
    %969 = vrot.lane.b32.xlu0 %v332, 120
    %v970 = vpop.permute.xlu0 %969
    %v973 = vsel %vm380, %v890, 0
    %975 = vmatprep.subr.mxu0 0.0
    %976 = vmatpush1.msra.mxu0 0.0
    %977 = vmatprep.subr.mxu0 0.0
    %978 = vmatpush1.msra.mxu0 0.0
    %979 = vmatprep.subr.mxu0 0.0
    %980 = vmatpush1.msra.mxu0 0.0
    %981 = vmatprep.subr.mxu0 0.0
    %982 = vmatpush1.msra.mxu0 0.0
    %983 = vmatprep.subr.mxu0 0.0
    %984 = vmatpush1.msra.mxu0 0.0
    %985 = vmatprep.subr.mxu0 0.0
    %986 = vmatpush1.msra.mxu0 0.0
    %987 = vmatprep.subr.mxu0 0.0
    %988 = vmatpush1.msra.mxu0 0.0
    %989 = vmatprep.subr.mxu0 0.0
    %990 = vmatpush1.msra.mxu0 0.0
    %991 = vmatprep.subr.mxu0 0.0
    %992 = vmatpush1.msra.mxu0 0.0
    %993 = vmatprep.subr.mxu0 0.0
    %994 = vmatpush1.msra.mxu0 0.0
    %995 = vmatprep.subr.mxu0 0.0
    %996 = vmatpush1.msra.mxu0 0.0
    %997 = vmatprep.subr.mxu0 0.0
    %998 = vmatpush1.msra.mxu0 0.0
    %999 = vmatprep.subr.mxu0 0.0
    %1000 = vmatpush1.msra.mxu0 0.0
    %1001 = vmatprep.subr.mxu0 0.0
    %1002 = vmatpush1.msra.mxu0 0.0
    %1003 = vmatprep.subr.mxu0 0.0
    %1004 = vmatpush1.msra.mxu0 0.0
    %1005 = vmatprep.subr.mxu0 0.0
    %1006 = vmatpush1.msra.mxu0 %v970
    %1007 = vmatprep.subr.mxu0 0.0
    %1008 = vmatpush2.msra.mxu0 0.0
    %1009 = vmatprep.subr.mxu0 0.0
    %1010 = vmatpush2.msra.mxu0 0.0
    %1011 = vmatprep.subr.mxu0 0.0
    %1012 = vmatpush2.msra.mxu0 0.0
    %1013 = vmatprep.subr.mxu0 0.0
    %1014 = vmatpush2.msra.mxu0 0.0
    %1015 = vmatprep.subr.mxu0 0.0
    %1016 = vmatpush2.msra.mxu0 0.0
    %1017 = vmatprep.subr.mxu0 0.0
    %1018 = vmatpush2.msra.mxu0 0.0
    %1019 = vmatprep.subr.mxu0 0.0
    %1020 = vmatpush2.msra.mxu0 0.0
    %1021 = vmatprep.subr.mxu0 0.0
    %1022 = vmatpush2.msra.mxu0 0.0
    %1023 = vmatprep.subr.mxu0 0.0
    %1024 = vmatpush2.msra.mxu0 0.0
    %1025 = vmatprep.subr.mxu0 0.0
    %1026 = vmatpush2.msra.mxu0 0.0
    %1027 = vmatprep.subr.mxu0 0.0
    %1028 = vmatpush2.msra.mxu0 0.0
    %1029 = vmatprep.subr.mxu0 0.0
    %1030 = vmatpush2.msra.mxu0 0.0
    %1031 = vmatprep.subr.mxu0 0.0
    %1032 = vmatpush2.msra.mxu0 0.0
    %1033 = vmatprep.subr.mxu0 0.0
    %1034 = vmatpush2.msra.mxu0 0.0
    %1035 = vmatprep.subr.mxu0 0.0
    %1036 = vmatpush2.msra.mxu0 0.0
    %1037 = vmatprep.subr.mxu0 0.0
    %1038 = vmatpush2.msra.mxu0 0.0
    %1039 = vmatprep.mubr.f32.mxu0 0.0
    %1040 = vmatmul.mubr.f32.gmra.mxu0 %v973
    %v1041 = vpop.f32.mrf.mxu0
    %v1042 = vadd.f32 0.0, %v1041
    %v1043 = vpop.f32.mrf.mxu0
    %1044 = vdwg.mxu0
    %v1046 = vsel %vm380, %v965, 0
    %v1049 = vsel %vm380, %v1042, 0
    %1051 = vmatprep.subr.mxu0 0.0
    %1052 = vmatpush1.msra.mxu0 0.0
    %1053 = vmatprep.subr.mxu0 0.0
    %1054 = vmatpush1.msra.mxu0 0.0
    %1055 = vmatprep.subr.mxu0 0.0
    %1056 = vmatpush1.msra.mxu0 0.0
    %1057 = vmatprep.subr.mxu0 0.0
    %1058 = vmatpush1.msra.mxu0 0.0
    %1059 = vmatprep.subr.mxu0 0.0
    %1060 = vmatpush1.msra.mxu0 0.0
    %1061 = vmatprep.subr.mxu0 0.0
    %1062 = vmatpush1.msra.mxu0 0.0
    %1063 = vmatprep.subr.mxu0 0.0
    %1064 = vmatpush1.msra.mxu0 0.0
    %1065 = vmatprep.subr.mxu0 0.0
    %1066 = vmatpush1.msra.mxu0 0.0
    %1067 = vmatprep.subr.mxu0 0.0
    %1068 = vmatpush1.msra.mxu0 0.0
    %1069 = vmatprep.subr.mxu0 0.0
    %1070 = vmatpush1.msra.mxu0 0.0
    %1071 = vmatprep.subr.mxu0 0.0
    %1072 = vmatpush1.msra.mxu0 0.0
    %1073 = vmatprep.subr.mxu0 0.0
    %1074 = vmatpush1.msra.mxu0 0.0
    %1075 = vmatprep.subr.mxu0 0.0
    %1076 = vmatpush1.msra.mxu0 0.0
    %1077 = vmatprep.subr.mxu0 0.0
    %1078 = vmatpush1.msra.mxu0 0.0
    %1079 = vmatprep.subr.mxu0 0.0
    %1080 = vmatpush1.msra.mxu0 0.0
    %1081 = vmatprep.subr.mxu0 0.0
    %1082 = vmatpush1.msra.mxu0 %v377
    %1083 = vmatprep.subr.mxu0 0.0
    %1084 = vmatpush2.msra.mxu0 0.0
    %1085 = vmatprep.subr.mxu0 0.0
    %1086 = vmatpush2.msra.mxu0 0.0
    %1087 = vmatprep.subr.mxu0 0.0
    %1088 = vmatpush2.msra.mxu0 0.0
    %1089 = vmatprep.subr.mxu0 0.0
    %1090 = vmatpush2.msra.mxu0 0.0
    %1091 = vmatprep.subr.mxu0 0.0
    %1092 = vmatpush2.msra.mxu0 0.0
    %1093 = vmatprep.subr.mxu0 0.0
    %1094 = vmatpush2.msra.mxu0 0.0
    %1095 = vmatprep.subr.mxu0 0.0
    %1096 = vmatpush2.msra.mxu0 0.0
    %1097 = vmatprep.subr.mxu0 0.0
    %1098 = vmatpush2.msra.mxu0 0.0
    %1099 = vmatprep.subr.mxu0 0.0
    %1100 = vmatpush2.msra.mxu0 0.0
    %1101 = vmatprep.subr.mxu0 0.0
    %1102 = vmatpush2.msra.mxu0 0.0
    %1103 = vmatprep.subr.mxu0 0.0
    %1104 = vmatpush2.msra.mxu0 0.0
    %1105 = vmatprep.subr.mxu0 0.0
    %1106 = vmatpush2.msra.mxu0 0.0
    %1107 = vmatprep.subr.mxu0 0.0
    %1108 = vmatpush2.msra.mxu0 0.0
    %1109 = vmatprep.subr.mxu0 0.0
    %1110 = vmatpush2.msra.mxu0 0.0
    %1111 = vmatprep.subr.mxu0 0.0
    %1112 = vmatpush2.msra.mxu0 0.0
    %1113 = vmatprep.subr.mxu0 0.0
    %1114 = vmatpush2.msra.mxu0 0.0
    %1115 = vmatprep.mubr.f32.mxu0 0.0
    %1116 = vmatmul.mubr.f32.gmra.mxu0 %v1046
    %v1117 = vpop.f32.mrf.mxu0
    %v1118 = vadd.f32 0.0, %v1117
    %v1119 = vpop.f32.mrf.mxu0
    %1120 = vmatprep.mubr.f32.mxu0 0.0
    %1121 = vmatmul.mubr.f32.gmra.mxu0 %v1049
    %v1122 = vpop.f32.mrf.mxu0
    %v1123 = vadd.f32 0.0, %v1122
    %v1124 = vpop.f32.mrf.mxu0
    %1125 = vdwg.mxu0
    %v1127 = vsel %vm380, %v633, 0
    %v1130 = vsel %vm380, %v706, 0
    %1132 = vmatprep.subr.mxu0 0.0
    %1133 = vmatpush1.msra.mxu0 0.0
    %1134 = vmatprep.subr.mxu0 0.0
    %1135 = vmatpush1.msra.mxu0 0.0
    %1136 = vmatprep.subr.mxu0 0.0
    %1137 = vmatpush1.msra.mxu0 0.0
    %1138 = vmatprep.subr.mxu0 0.0
    %1139 = vmatpush1.msra.mxu0 0.0
    %1140 = vmatprep.subr.mxu0 0.0
    %1141 = vmatpush1.msra.mxu0 0.0
    %1142 = vmatprep.subr.mxu0 0.0
    %1143 = vmatpush1.msra.mxu0 0.0
    %1144 = vmatprep.subr.mxu0 0.0
    %1145 = vmatpush1.msra.mxu0 0.0
    %1146 = vmatprep.subr.mxu0 0.0
    %1147 = vmatpush1.msra.mxu0 0.0
    %1148 = vmatprep.subr.mxu0 0.0
    %1149 = vmatpush1.msra.mxu0 0.0
    %1150 = vmatprep.subr.mxu0 0.0
    %1151 = vmatpush1.msra.mxu0 0.0
    %1152 = vmatprep.subr.mxu0 0.0
    %1153 = vmatpush1.msra.mxu0 0.0
    %1154 = vmatprep.subr.mxu0 0.0
    %1155 = vmatpush1.msra.mxu0 0.0
    %1156 = vmatprep.subr.mxu0 0.0
    %1157 = vmatpush1.msra.mxu0 0.0
    %1158 = vmatprep.subr.mxu0 0.0
    %1159 = vmatpush1.msra.mxu0 0.0
    %1160 = vmatprep.subr.mxu0 0.0
    %1161 = vmatpush1.msra.mxu0 0.0
    %1162 = vmatprep.subr.mxu0 0.0
    %1163 = vmatpush1.msra.mxu0 %v376
    %1164 = vmatprep.subr.mxu0 0.0
    %1165 = vmatpush2.msra.mxu0 0.0
    %1166 = vmatprep.subr.mxu0 0.0
    %1167 = vmatpush2.msra.mxu0 0.0
    %1168 = vmatprep.subr.mxu0 0.0
    %1169 = vmatpush2.msra.mxu0 0.0
    %1170 = vmatprep.subr.mxu0 0.0
    %1171 = vmatpush2.msra.mxu0 0.0
    %1172 = vmatprep.subr.mxu0 0.0
    %1173 = vmatpush2.msra.mxu0 0.0
    %1174 = vmatprep.subr.mxu0 0.0
    %1175 = vmatpush2.msra.mxu0 0.0
    %1176 = vmatprep.subr.mxu0 0.0
    %1177 = vmatpush2.msra.mxu0 0.0
    %1178 = vmatprep.subr.mxu0 0.0
    %1179 = vmatpush2.msra.mxu0 0.0
    %1180 = vmatprep.subr.mxu0 0.0
    %1181 = vmatpush2.msra.mxu0 0.0
    %1182 = vmatprep.subr.mxu0 0.0
    %1183 = vmatpush2.msra.mxu0 0.0
    %1184 = vmatprep.subr.mxu0 0.0
    %1185 = vmatpush2.msra.mxu0 0.0
    %1186 = vmatprep.subr.mxu0 0.0
    %1187 = vmatpush2.msra.mxu0 0.0
    %1188 = vmatprep.subr.mxu0 0.0
    %1189 = vmatpush2.msra.mxu0 0.0
    %1190 = vmatprep.subr.mxu0 0.0
    %1191 = vmatpush2.msra.mxu0 0.0
    %1192 = vmatprep.subr.mxu0 0.0
    %1193 = vmatpush2.msra.mxu0 0.0
    %1194 = vmatprep.subr.mxu0 0.0
    %1195 = vmatpush2.msra.mxu0 0.0
    %1196 = vmatprep.mubr.f32.mxu0 0.0
    %1197 = vmatmul.mubr.f32.gmra.mxu0 %v1127
    %v1198 = vpop.f32.mrf.mxu0
    %v1199 = vadd.f32 %v1118, %v1198
    %v1200 = vpop.f32.mrf.mxu0
    %1201 = vmatprep.mubr.f32.mxu0 0.0
    %1202 = vmatmul.mubr.f32.gmra.mxu0 %v1130
    %v1203 = vpop.f32.mrf.mxu0
    %v1204 = vadd.f32 %v1123, %v1203
    %v1205 = vpop.f32.mrf.mxu0
    %1206 = vdwg.mxu0
    %1207 = vrot.lane.b32.xlu0 %v169, 112
    %v1208 = vpop.permute.xlu0 %1207
    %1209 = vrot.lane.b32.xlu0 %v248, 112
    %v1210 = vpop.permute.xlu0 %1209
    %v1211 = vsel %vm380, %v1208, 0
    %v1213 = vsel %vm380, %v1210, 0
    %1215 = vmatprep.subr.mxu0 0.0
    %1216 = vmatpush1.xpose.msra.mxu0 0.0
    %1217 = vmatprep.subr.mxu0 0.0
    %1218 = vmatpush1.xpose.msra.mxu0 0.0
    %1219 = vmatprep.subr.mxu0 0.0
    %1220 = vmatpush1.xpose.msra.mxu0 0.0
    %1221 = vmatprep.subr.mxu0 0.0
    %1222 = vmatpush1.xpose.msra.mxu0 0.0
    %1223 = vmatprep.subr.mxu0 0.0
    %1224 = vmatpush1.xpose.msra.mxu0 0.0
    %1225 = vmatprep.subr.mxu0 0.0
    %1226 = vmatpush1.xpose.msra.mxu0 0.0
    %1227 = vmatprep.subr.mxu0 0.0
    %1228 = vmatpush1.xpose.msra.mxu0 0.0
    %1229 = vmatprep.subr.mxu0 0.0
    %1230 = vmatpush1.xpose.msra.mxu0 0.0
    %1231 = vmatprep.subr.mxu0 0.0
    %1232 = vmatpush1.xpose.msra.mxu0 0.0
    %1233 = vmatprep.subr.mxu0 0.0
    %1234 = vmatpush1.xpose.msra.mxu0 0.0
    %1235 = vmatprep.subr.mxu0 0.0
    %1236 = vmatpush1.xpose.msra.mxu0 0.0
    %1237 = vmatprep.subr.mxu0 0.0
    %1238 = vmatpush1.xpose.msra.mxu0 0.0
    %1239 = vmatprep.subr.mxu0 0.0
    %1240 = vmatpush1.xpose.msra.mxu0 0.0
    %1241 = vmatprep.subr.mxu0 0.0
    %1242 = vmatpush1.xpose.msra.mxu0 0.0
    %1243 = vmatprep.subr.mxu0 0.0
    %1244 = vmatpush1.xpose.msra.mxu0 0.0
    %1245 = vmatprep.subr.mxu0 0.0
    %1246 = vmatpush1.xpose.msra.mxu0 %v1213
    %1247 = vmatprep.subr.mxu0 0.0
    %1248 = vmatpush2.xpose.msra.mxu0 0.0
    %1249 = vmatprep.subr.mxu0 0.0
    %1250 = vmatpush2.xpose.msra.mxu0 0.0
    %1251 = vmatprep.subr.mxu0 0.0
    %1252 = vmatpush2.xpose.msra.mxu0 0.0
    %1253 = vmatprep.subr.mxu0 0.0
    %1254 = vmatpush2.xpose.msra.mxu0 0.0
    %1255 = vmatprep.subr.mxu0 0.0
    %1256 = vmatpush2.xpose.msra.mxu0 0.0
    %1257 = vmatprep.subr.mxu0 0.0
    %1258 = vmatpush2.xpose.msra.mxu0 0.0
    %1259 = vmatprep.subr.mxu0 0.0
    %1260 = vmatpush2.xpose.msra.mxu0 0.0
    %1261 = vmatprep.subr.mxu0 0.0
    %1262 = vmatpush2.xpose.msra.mxu0 0.0
    %1263 = vmatprep.subr.mxu0 0.0
    %1264 = vmatpush2.xpose.msra.mxu0 0.0
    %1265 = vmatprep.subr.mxu0 0.0
    %1266 = vmatpush2.xpose.msra.mxu0 0.0
    %1267 = vmatprep.subr.mxu0 0.0
    %1268 = vmatpush2.xpose.msra.mxu0 0.0
    %1269 = vmatprep.subr.mxu0 0.0
    %1270 = vmatpush2.xpose.msra.mxu0 0.0
    %1271 = vmatprep.subr.mxu0 0.0
    %1272 = vmatpush2.xpose.msra.mxu0 0.0
    %1273 = vmatprep.subr.mxu0 0.0
    %1274 = vmatpush2.xpose.msra.mxu0 0.0
    %1275 = vmatprep.subr.mxu0 0.0
    %1276 = vmatpush2.xpose.msra.mxu0 0.0
    %1277 = vmatprep.subr.mxu0 0.0
    %1278 = vmatpush2.xpose.msra.mxu0 0.0
    %1279 = vmatprep.mubr.f32.mxu0 0.0
    %1280 = vmatmul.mubr.f32.gmra.mxu0 %v1211
    %v1281 = vpop.f32.mrf.mxu0
    %v1282 = vadd.f32 0.0, %v1281
    %v1283 = vpop.f32.mrf.mxu0
    %1284 = vdwg.mxu0
    %1285 = vrot.lane.b32.xlu0 %v174, 112
    %v1286 = vpop.permute.xlu0 %1285
    %1287 = vrot.lane.b32.xlu0 %v253, 112
    %v1288 = vpop.permute.xlu0 %1287
    %v1289 = vsel %vm380, %v1286, 0
    %v1291 = vsel %vm380, %v1288, 0
    %1293 = vmatprep.subr.mxu0 0.0
    %1294 = vmatpush1.xpose.msra.mxu0 0.0
    %1295 = vmatprep.subr.mxu0 0.0
    %1296 = vmatpush1.xpose.msra.mxu0 0.0
    %1297 = vmatprep.subr.mxu0 0.0
    %1298 = vmatpush1.xpose.msra.mxu0 0.0
    %1299 = vmatprep.subr.mxu0 0.0
    %1300 = vmatpush1.xpose.msra.mxu0 0.0
    %1301 = vmatprep.subr.mxu0 0.0
    %1302 = vmatpush1.xpose.msra.mxu0 0.0
    %1303 = vmatprep.subr.mxu0 0.0
    %1304 = vmatpush1.xpose.msra.mxu0 0.0
    %1305 = vmatprep.subr.mxu0 0.0
    %1306 = vmatpush1.xpose.msra.mxu0 0.0
    %1307 = vmatprep.subr.mxu0 0.0
    %1308 = vmatpush1.xpose.msra.mxu0 0.0
    %1309 = vmatprep.subr.mxu0 0.0
    %1310 = vmatpush1.xpose.msra.mxu0 0.0
    %1311 = vmatprep.subr.mxu0 0.0
    %1312 = vmatpush1.xpose.msra.mxu0 0.0
    %1313 = vmatprep.subr.mxu0 0.0
    %1314 = vmatpush1.xpose.msra.mxu0 0.0
    %1315 = vmatprep.subr.mxu0 0.0
    %1316 = vmatpush1.xpose.msra.mxu0 0.0
    %1317 = vmatprep.subr.mxu0 0.0
    %1318 = vmatpush1.xpose.msra.mxu0 0.0
    %1319 = vmatprep.subr.mxu0 0.0
    %1320 = vmatpush1.xpose.msra.mxu0 0.0
    %1321 = vmatprep.subr.mxu0 0.0
    %1322 = vmatpush1.xpose.msra.mxu0 0.0
    %1323 = vmatprep.subr.mxu0 0.0
    %1324 = vmatpush1.xpose.msra.mxu0 %v1291
    %1325 = vmatprep.subr.mxu0 0.0
    %1326 = vmatpush2.xpose.msra.mxu0 0.0
    %1327 = vmatprep.subr.mxu0 0.0
    %1328 = vmatpush2.xpose.msra.mxu0 0.0
    %1329 = vmatprep.subr.mxu0 0.0
    %1330 = vmatpush2.xpose.msra.mxu0 0.0
    %1331 = vmatprep.subr.mxu0 0.0
    %1332 = vmatpush2.xpose.msra.mxu0 0.0
    %1333 = vmatprep.subr.mxu0 0.0
    %1334 = vmatpush2.xpose.msra.mxu0 0.0
    %1335 = vmatprep.subr.mxu0 0.0
    %1336 = vmatpush2.xpose.msra.mxu0 0.0
    %1337 = vmatprep.subr.mxu0 0.0
    %1338 = vmatpush2.xpose.msra.mxu0 0.0
    %1339 = vmatprep.subr.mxu0 0.0
    %1340 = vmatpush2.xpose.msra.mxu0 0.0
    %1341 = vmatprep.subr.mxu0 0.0
    %1342 = vmatpush2.xpose.msra.mxu0 0.0
    %1343 = vmatprep.subr.mxu0 0.0
    %1344 = vmatpush2.xpose.msra.mxu0 0.0
    %1345 = vmatprep.subr.mxu0 0.0
    %1346 = vmatpush2.xpose.msra.mxu0 0.0
    %1347 = vmatprep.subr.mxu0 0.0
    %1348 = vmatpush2.xpose.msra.mxu0 0.0
    %1349 = vmatprep.subr.mxu0 0.0
    %1350 = vmatpush2.xpose.msra.mxu0 0.0
    %1351 = vmatprep.subr.mxu0 0.0
    %1352 = vmatpush2.xpose.msra.mxu0 0.0
    %1353 = vmatprep.subr.mxu0 0.0
    %1354 = vmatpush2.xpose.msra.mxu0 0.0
    %1355 = vmatprep.subr.mxu0 0.0
    %1356 = vmatpush2.xpose.msra.mxu0 0.0
    %1357 = vmatprep.mubr.f32.mxu0 0.0
    %1358 = vmatmul.mubr.f32.gmra.mxu0 %v1289
    %v1359 = vpop.f32.mrf.mxu0
    %v1360 = vadd.f32 0.0, %v1359
    %v1361 = vpop.f32.mrf.mxu0
    %1362 = vdwg.mxu0
    %v1363 = vmul.f32 %v1282, 0.35355338
    %v1364 = vmul.f32 %v1360, 0.35355338
    %v1365 = vsel %vm537, %v1363, -1000000.0
    %v1366 = vsel %vm538, %v1364, -1000000.0
    %v1367 = vsel %vm380, %v1365, -inf
    %1368 = vmax.xlane.f32.xlu0 %v1367
    %v1369 = vpop.xlane.xlu0 %1368
    %v1370 = vsel %vm380, %v1366, -inf
    %1371 = vmax.xlane.f32.xlu0 %v1370
    %v1372 = vpop.xlane.xlu0 %1371
    %v1373 = vsub.f32 %v1365, %v1369
    %v1374 = vsub.f32 %v1366, %v1372
    %v1375 = vmul.f32 %v1373, 1.442695
    %v1376 = vpow.pop %v1375
    %v1377 = vmul.f32 %v1374, 1.442695
    %v1378 = vpow.pop %v1377
    %v1379 = vsel %vm380, %v1376, 0.0
    %1380 = vadd.xlane.f32.xlu0 %v1379
    %v1381 = vpop.xlane.xlu0 %1380
    %v1382 = vsel %vm380, %v1378, 0.0
    %1383 = vadd.xlane.f32.xlu0 %v1382
    %v1384 = vpop.xlane.xlu0 %1383
    %v1385 = vrcp.pop %v1381
    %v1386 = vrcp.pop %v1384
    %v1387 = vmul.f32 %v1376, %v1385
    %v1388 = vmul.f32 %v1378, %v1386
    %1389 = vrot.lane.b32.xlu0 %v327, 112
    %v1390 = vpop.permute.xlu0 %1389
    %v1393 = vsel %vm380, %v1387, 0
    %1395 = vmatprep.subr.mxu0 0.0
    %1396 = vmatpush1.msra.mxu0 0.0
    %1397 = vmatprep.subr.mxu0 0.0
    %1398 = vmatpush1.msra.mxu0 0.0
    %1399 = vmatprep.subr.mxu0 0.0
    %1400 = vmatpush1.msra.mxu0 0.0
    %1401 = vmatprep.subr.mxu0 0.0
    %1402 = vmatpush1.msra.mxu0 0.0
    %1403 = vmatprep.subr.mxu0 0.0
    %1404 = vmatpush1.msra.mxu0 0.0
    %1405 = vmatprep.subr.mxu0 0.0
    %1406 = vmatpush1.msra.mxu0 0.0
    %1407 = vmatprep.subr.mxu0 0.0
    %1408 = vmatpush1.msra.mxu0 0.0
    %1409 = vmatprep.subr.mxu0 0.0
    %1410 = vmatpush1.msra.mxu0 0.0
    %1411 = vmatprep.subr.mxu0 0.0
    %1412 = vmatpush1.msra.mxu0 0.0
    %1413 = vmatprep.subr.mxu0 0.0
    %1414 = vmatpush1.msra.mxu0 0.0
    %1415 = vmatprep.subr.mxu0 0.0
    %1416 = vmatpush1.msra.mxu0 0.0
    %1417 = vmatprep.subr.mxu0 0.0
    %1418 = vmatpush1.msra.mxu0 0.0
    %1419 = vmatprep.subr.mxu0 0.0
    %1420 = vmatpush1.msra.mxu0 0.0
    %1421 = vmatprep.subr.mxu0 0.0
    %1422 = vmatpush1.msra.mxu0 0.0
    %1423 = vmatprep.subr.mxu0 0.0
    %1424 = vmatpush1.msra.mxu0 0.0
    %1425 = vmatprep.subr.mxu0 0.0
    %1426 = vmatpush1.msra.mxu0 %v1390
    %1427 = vmatprep.subr.mxu0 0.0
    %1428 = vmatpush2.msra.mxu0 0.0
    %1429 = vmatprep.subr.mxu0 0.0
    %1430 = vmatpush2.msra.mxu0 0.0
    %1431 = vmatprep.subr.mxu0 0.0
    %1432 = vmatpush2.msra.mxu0 0.0
    %1433 = vmatprep.subr.mxu0 0.0
    %1434 = vmatpush2.msra.mxu0 0.0
    %1435 = vmatprep.subr.mxu0 0.0
    %1436 = vmatpush2.msra.mxu0 0.0
    %1437 = vmatprep.subr.mxu0 0.0
    %1438 = vmatpush2.msra.mxu0 0.0
    %1439 = vmatprep.subr.mxu0 0.0
    %1440 = vmatpush2.msra.mxu0 0.0
    %1441 = vmatprep.subr.mxu0 0.0
    %1442 = vmatpush2.msra.mxu0 0.0
    %1443 = vmatprep.subr.mxu0 0.0
    %1444 = vmatpush2.msra.mxu0 0.0
    %1445 = vmatprep.subr.mxu0 0.0
    %1446 = vmatpush2.msra.mxu0 0.0
    %1447 = vmatprep.subr.mxu0 0.0
    %1448 = vmatpush2.msra.mxu0 0.0
    %1449 = vmatprep.subr.mxu0 0.0
    %1450 = vmatpush2.msra.mxu0 0.0
    %1451 = vmatprep.subr.mxu0 0.0
    %1452 = vmatpush2.msra.mxu0 0.0
    %1453 = vmatprep.subr.mxu0 0.0
    %1454 = vmatpush2.msra.mxu0 0.0
    %1455 = vmatprep.subr.mxu0 0.0
    %1456 = vmatpush2.msra.mxu0 0.0
    %1457 = vmatprep.subr.mxu0 0.0
    %1458 = vmatpush2.msra.mxu0 0.0
    %1459 = vmatprep.mubr.f32.mxu0 0.0
    %1460 = vmatmul.mubr.f32.gmra.mxu0 %v1393
    %v1461 = vpop.f32.mrf.mxu0
    %v1462 = vadd.f32 0.0, %v1461
    %v1463 = vpop.f32.mrf.mxu0
    %1464 = vdwg.mxu0
    %1465 = vrot.lane.b32.xlu0 %v332, 112
    %v1466 = vpop.permute.xlu0 %1465
    %v1469 = vsel %vm380, %v1388, 0
    %1471 = vmatprep.subr.mxu0 0.0
    %1472 = vmatpush1.msra.mxu0 0.0
    %1473 = vmatprep.subr.mxu0 0.0
    %1474 = vmatpush1.msra.mxu0 0.0
    %1475 = vmatprep.subr.mxu0 0.0
    %1476 = vmatpush1.msra.mxu0 0.0
    %1477 = vmatprep.subr.mxu0 0.0
    %1478 = vmatpush1.msra.mxu0 0.0
    %1479 = vmatprep.subr.mxu0 0.0
    %1480 = vmatpush1.msra.mxu0 0.0
    %1481 = vmatprep.subr.mxu0 0.0
    %1482 = vmatpush1.msra.mxu0 0.0
    %1483 = vmatprep.subr.mxu0 0.0
    %1484 = vmatpush1.msra.mxu0 0.0
    %1485 = vmatprep.subr.mxu0 0.0
    %1486 = vmatpush1.msra.mxu0 0.0
    %1487 = vmatprep.subr.mxu0 0.0
    %1488 = vmatpush1.msra.mxu0 0.0
    %1489 = vmatprep.subr.mxu0 0.0
    %1490 = vmatpush1.msra.mxu0 0.0
    %1491 = vmatprep.subr.mxu0 0.0
    %1492 = vmatpush1.msra.mxu0 0.0
    %1493 = vmatprep.subr.mxu0 0.0
    %1494 = vmatpush1.msra.mxu0 0.0
    %1495 = vmatprep.subr.mxu0 0.0
    %1496 = vmatpush1.msra.mxu0 0.0
    %1497 = vmatprep.subr.mxu0 0.0
    %1498 = vmatpush1.msra.mxu0 0.0
    %1499 = vmatprep.subr.mxu0 0.0
    %1500 = vmatpush1.msra.mxu0 0.0
    %1501 = vmatprep.subr.mxu0 0.0
    %1502 = vmatpush1.msra.mxu0 %v1466
    %1503 = vmatprep.subr.mxu0 0.0
    %1504 = vmatpush2.msra.mxu0 0.0
    %1505 = vmatprep.subr.mxu0 0.0
    %1506 = vmatpush2.msra.mxu0 0.0
    %1507 = vmatprep.subr.mxu0 0.0
    %1508 = vmatpush2.msra.mxu0 0.0
    %1509 = vmatprep.subr.mxu0 0.0
    %1510 = vmatpush2.msra.mxu0 0.0
    %1511 = vmatprep.subr.mxu0 0.0
    %1512 = vmatpush2.msra.mxu0 0.0
    %1513 = vmatprep.subr.mxu0 0.0
    %1514 = vmatpush2.msra.mxu0 0.0
    %1515 = vmatprep.subr.mxu0 0.0
    %1516 = vmatpush2.msra.mxu0 0.0
    %1517 = vmatprep.subr.mxu0 0.0
    %1518 = vmatpush2.msra.mxu0 0.0
    %1519 = vmatprep.subr.mxu0 0.0
    %1520 = vmatpush2.msra.mxu0 0.0
    %1521 = vmatprep.subr.mxu0 0.0
    %1522 = vmatpush2.msra.mxu0 0.0
    %1523 = vmatprep.subr.mxu0 0.0
    %1524 = vmatpush2.msra.mxu0 0.0
    %1525 = vmatprep.subr.mxu0 0.0
    %1526 = vmatpush2.msra.mxu0 0.0
    %1527 = vmatprep.subr.mxu0 0.0
    %1528 = vmatpush2.msra.mxu0 0.0
    %1529 = vmatprep.subr.mxu0 0.0
    %1530 = vmatpush2.msra.mxu0 0.0
    %1531 = vmatprep.subr.mxu0 0.0
    %1532 = vmatpush2.msra.mxu0 0.0
    %1533 = vmatprep.subr.mxu0 0.0
    %1534 = vmatpush2.msra.mxu0 0.0
    %1535 = vmatprep.mubr.f32.mxu0 0.0
    %1536 = vmatmul.mubr.f32.gmra.mxu0 %v1469
    %v1537 = vpop.f32.mrf.mxu0
    %v1538 = vadd.f32 0.0, %v1537
    %v1539 = vpop.f32.mrf.mxu0
    %1540 = vdwg.mxu0
    %v1542 = vsel %vm380, %v1462, 0
    %v1545 = vsel %vm380, %v1538, 0
    %1547 = vmatprep.subr.mxu0 0.0
    %1548 = vmatpush1.msra.mxu0 0.0
    %1549 = vmatprep.subr.mxu0 0.0
    %1550 = vmatpush1.msra.mxu0 0.0
    %1551 = vmatprep.subr.mxu0 0.0
    %1552 = vmatpush1.msra.mxu0 0.0
    %1553 = vmatprep.subr.mxu0 0.0
    %1554 = vmatpush1.msra.mxu0 0.0
    %1555 = vmatprep.subr.mxu0 0.0
    %1556 = vmatpush1.msra.mxu0 0.0
    %1557 = vmatprep.subr.mxu0 0.0
    %1558 = vmatpush1.msra.mxu0 0.0
    %1559 = vmatprep.subr.mxu0 0.0
    %1560 = vmatpush1.msra.mxu0 0.0
    %1561 = vmatprep.subr.mxu0 0.0
    %1562 = vmatpush1.msra.mxu0 0.0
    %1563 = vmatprep.subr.mxu0 0.0
    %1564 = vmatpush1.msra.mxu0 0.0
    %1565 = vmatprep.subr.mxu0 0.0
    %1566 = vmatpush1.msra.mxu0 0.0
    %1567 = vmatprep.subr.mxu0 0.0
    %1568 = vmatpush1.msra.mxu0 0.0
    %1569 = vmatprep.subr.mxu0 0.0
    %1570 = vmatpush1.msra.mxu0 0.0
    %1571 = vmatprep.subr.mxu0 0.0
    %1572 = vmatpush1.msra.mxu0 0.0
    %1573 = vmatprep.subr.mxu0 0.0
    %1574 = vmatpush1.msra.mxu0 0.0
    %1575 = vmatprep.subr.mxu0 0.0
    %1576 = vmatpush1.msra.mxu0 0.0
    %1577 = vmatprep.subr.mxu0 0.0
    %1578 = vmatpush1.msra.mxu0 %v378
    %1579 = vmatprep.subr.mxu0 0.0
    %1580 = vmatpush2.msra.mxu0 0.0
    %1581 = vmatprep.subr.mxu0 0.0
    %1582 = vmatpush2.msra.mxu0 0.0
    %1583 = vmatprep.subr.mxu0 0.0
    %1584 = vmatpush2.msra.mxu0 0.0
    %1585 = vmatprep.subr.mxu0 0.0
    %1586 = vmatpush2.msra.mxu0 0.0
    %1587 = vmatprep.subr.mxu0 0.0
    %1588 = vmatpush2.msra.mxu0 0.0
    %1589 = vmatprep.subr.mxu0 0.0
    %1590 = vmatpush2.msra.mxu0 0.0
    %1591 = vmatprep.subr.mxu0 0.0
    %1592 = vmatpush2.msra.mxu0 0.0
    %1593 = vmatprep.subr.mxu0 0.0
    %1594 = vmatpush2.msra.mxu0 0.0
    %1595 = vmatprep.subr.mxu0 0.0
    %1596 = vmatpush2.msra.mxu0 0.0
    %1597 = vmatprep.subr.mxu0 0.0
    %1598 = vmatpush2.msra.mxu0 0.0
    %1599 = vmatprep.subr.mxu0 0.0
    %1600 = vmatpush2.msra.mxu0 0.0
    %1601 = vmatprep.subr.mxu0 0.0
    %1602 = vmatpush2.msra.mxu0 0.0
    %1603 = vmatprep.subr.mxu0 0.0
    %1604 = vmatpush2.msra.mxu0 0.0
    %1605 = vmatprep.subr.mxu0 0.0
    %1606 = vmatpush2.msra.mxu0 0.0
    %1607 = vmatprep.subr.mxu0 0.0
    %1608 = vmatpush2.msra.mxu0 0.0
    %1609 = vmatprep.subr.mxu0 0.0
    %1610 = vmatpush2.msra.mxu0 0.0
    %1611 = vmatprep.mubr.f32.mxu0 0.0
    %1612 = vmatmul.mubr.f32.gmra.mxu0 %v1542
    %v1613 = vpop.f32.mrf.mxu0
    %v1614 = vadd.f32 0.0, %v1613
    %v1615 = vpop.f32.mrf.mxu0
    %1616 = vmatprep.mubr.f32.mxu0 0.0
    %1617 = vmatmul.mubr.f32.gmra.mxu0 %v1545
    %v1618 = vpop.f32.mrf.mxu0
    %v1619 = vadd.f32 0.0, %v1618
    %v1620 = vpop.f32.mrf.mxu0
    %1621 = vdwg.mxu0
    %v1622 = vadd.f32 %v1199, %v1614
    %v1623 = vadd.f32 %v1204, %v1619
    %1624 = vrot.lane.b32.xlu0 %v169, 104
    %v1625 = vpop.permute.xlu0 %1624
    %1626 = vrot.lane.b32.xlu0 %v248, 104
    %v1627 = vpop.permute.xlu0 %1626
    %v1628 = vsel %vm380, %v1625, 0
    %v1630 = vsel %vm380, %v1627, 0
    %1632 = vmatprep.subr.mxu0 0.0
    %1633 = vmatpush1.xpose.msra.mxu0 0.0
    %1634 = vmatprep.subr.mxu0 0.0
    %1635 = vmatpush1.xpose.msra.mxu0 0.0
    %1636 = vmatprep.subr.mxu0 0.0
    %1637 = vmatpush1.xpose.msra.mxu0 0.0
    %1638 = vmatprep.subr.mxu0 0.0
    %1639 = vmatpush1.xpose.msra.mxu0 0.0
    %1640 = vmatprep.subr.mxu0 0.0
    %1641 = vmatpush1.xpose.msra.mxu0 0.0
    %1642 = vmatprep.subr.mxu0 0.0
    %1643 = vmatpush1.xpose.msra.mxu0 0.0
    %1644 = vmatprep.subr.mxu0 0.0
    %1645 = vmatpush1.xpose.msra.mxu0 0.0
    %1646 = vmatprep.subr.mxu0 0.0
    %1647 = vmatpush1.xpose.msra.mxu0 0.0
    %1648 = vmatprep.subr.mxu0 0.0
    %1649 = vmatpush1.xpose.msra.mxu0 0.0
    %1650 = vmatprep.subr.mxu0 0.0
    %1651 = vmatpush1.xpose.msra.mxu0 0.0
    %1652 = vmatprep.subr.mxu0 0.0
    %1653 = vmatpush1.xpose.msra.mxu0 0.0
    %1654 = vmatprep.subr.mxu0 0.0
    %1655 = vmatpush1.xpose.msra.mxu0 0.0
    %1656 = vmatprep.subr.mxu0 0.0
    %1657 = vmatpush1.xpose.msra.mxu0 0.0
    %1658 = vmatprep.subr.mxu0 0.0
    %1659 = vmatpush1.xpose.msra.mxu0 0.0
    %1660 = vmatprep.subr.mxu0 0.0
    %1661 = vmatpush1.xpose.msra.mxu0 0.0
    %1662 = vmatprep.subr.mxu0 0.0
    %1663 = vmatpush1.xpose.msra.mxu0 %v1630
    %1664 = vmatprep.subr.mxu0 0.0
    %1665 = vmatpush2.xpose.msra.mxu0 0.0
    %1666 = vmatprep.subr.mxu0 0.0
    %1667 = vmatpush2.xpose.msra.mxu0 0.0
    %1668 = vmatprep.subr.mxu0 0.0
    %1669 = vmatpush2.xpose.msra.mxu0 0.0
    %1670 = vmatprep.subr.mxu0 0.0
    %1671 = vmatpush2.xpose.msra.mxu0 0.0
    %1672 = vmatprep.subr.mxu0 0.0
    %1673 = vmatpush2.xpose.msra.mxu0 0.0
    %1674 = vmatprep.subr.mxu0 0.0
    %1675 = vmatpush2.xpose.msra.mxu0 0.0
    %1676 = vmatprep.subr.mxu0 0.0
    %1677 = vmatpush2.xpose.msra.mxu0 0.0
    %1678 = vmatprep.subr.mxu0 0.0
    %1679 = vmatpush2.xpose.msra.mxu0 0.0
    %1680 = vmatprep.subr.mxu0 0.0
    %1681 = vmatpush2.xpose.msra.mxu0 0.0
    %1682 = vmatprep.subr.mxu0 0.0
    %1683 = vmatpush2.xpose.msra.mxu0 0.0
    %1684 = vmatprep.subr.mxu0 0.0
    %1685 = vmatpush2.xpose.msra.mxu0 0.0
    %1686 = vmatprep.subr.mxu0 0.0
    %1687 = vmatpush2.xpose.msra.mxu0 0.0
    %1688 = vmatprep.subr.mxu0 0.0
    %1689 = vmatpush2.xpose.msra.mxu0 0.0
    %1690 = vmatprep.subr.mxu0 0.0
    %1691 = vmatpush2.xpose.msra.mxu0 0.0
    %1692 = vmatprep.subr.mxu0 0.0
    %1693 = vmatpush2.xpose.msra.mxu0 0.0
    %1694 = vmatprep.subr.mxu0 0.0
    %1695 = vmatpush2.xpose.msra.mxu0 0.0
    %1696 = vmatprep.mubr.f32.mxu0 0.0
    %1697 = vmatmul.mubr.f32.gmra.mxu0 %v1628
    %v1698 = vpop.f32.mrf.mxu0
    %v1699 = vadd.f32 0.0, %v1698
    %v1700 = vpop.f32.mrf.mxu0
    %1701 = vdwg.mxu0
    %1702 = vrot.lane.b32.xlu0 %v174, 104
    %v1703 = vpop.permute.xlu0 %1702
    %1704 = vrot.lane.b32.xlu0 %v253, 104
    %v1705 = vpop.permute.xlu0 %1704
    %v1706 = vsel %vm380, %v1703, 0
    %v1708 = vsel %vm380, %v1705, 0
    %1710 = vmatprep.subr.mxu0 0.0
    %1711 = vmatpush1.xpose.msra.mxu0 0.0
    %1712 = vmatprep.subr.mxu0 0.0
    %1713 = vmatpush1.xpose.msra.mxu0 0.0
    %1714 = vmatprep.subr.mxu0 0.0
    %1715 = vmatpush1.xpose.msra.mxu0 0.0
    %1716 = vmatprep.subr.mxu0 0.0
    %1717 = vmatpush1.xpose.msra.mxu0 0.0
    %1718 = vmatprep.subr.mxu0 0.0
    %1719 = vmatpush1.xpose.msra.mxu0 0.0
    %1720 = vmatprep.subr.mxu0 0.0
    %1721 = vmatpush1.xpose.msra.mxu0 0.0
    %1722 = vmatprep.subr.mxu0 0.0
    %1723 = vmatpush1.xpose.msra.mxu0 0.0
    %1724 = vmatprep.subr.mxu0 0.0
    %1725 = vmatpush1.xpose.msra.mxu0 0.0
    %1726 = vmatprep.subr.mxu0 0.0
    %1727 = vmatpush1.xpose.msra.mxu0 0.0
    %1728 = vmatprep.subr.mxu0 0.0
    %1729 = vmatpush1.xpose.msra.mxu0 0.0
    %1730 = vmatprep.subr.mxu0 0.0
    %1731 = vmatpush1.xpose.msra.mxu0 0.0
    %1732 = vmatprep.subr.mxu0 0.0
    %1733 = vmatpush1.xpose.msra.mxu0 0.0
    %1734 = vmatprep.subr.mxu0 0.0
    %1735 = vmatpush1.xpose.msra.mxu0 0.0
    %1736 = vmatprep.subr.mxu0 0.0
    %1737 = vmatpush1.xpose.msra.mxu0 0.0
    %1738 = vmatprep.subr.mxu0 0.0
    %1739 = vmatpush1.xpose.msra.mxu0 0.0
    %1740 = vmatprep.subr.mxu0 0.0
    %1741 = vmatpush1.xpose.msra.mxu0 %v1708
    %1742 = vmatprep.subr.mxu0 0.0
    %1743 = vmatpush2.xpose.msra.mxu0 0.0
    %1744 = vmatprep.subr.mxu0 0.0
    %1745 = vmatpush2.xpose.msra.mxu0 0.0
    %1746 = vmatprep.subr.mxu0 0.0
    %1747 = vmatpush2.xpose.msra.mxu0 0.0
    %1748 = vmatprep.subr.mxu0 0.0
    %1749 = vmatpush2.xpose.msra.mxu0 0.0
    %1750 = vmatprep.subr.mxu0 0.0
    %1751 = vmatpush2.xpose.msra.mxu0 0.0
    %1752 = vmatprep.subr.mxu0 0.0
    %1753 = vmatpush2.xpose.msra.mxu0 0.0
    %1754 = vmatprep.subr.mxu0 0.0
    %1755 = vmatpush2.xpose.msra.mxu0 0.0
    %1756 = vmatprep.subr.mxu0 0.0
    %1757 = vmatpush2.xpose.msra.mxu0 0.0
    %1758 = vmatprep.subr.mxu0 0.0
    %1759 = vmatpush2.xpose.msra.mxu0 0.0
    %1760 = vmatprep.subr.mxu0 0.0
    %1761 = vmatpush2.xpose.msra.mxu0 0.0
    %1762 = vmatprep.subr.mxu0 0.0
    %1763 = vmatpush2.xpose.msra.mxu0 0.0
    %1764 = vmatprep.subr.mxu0 0.0
    %1765 = vmatpush2.xpose.msra.mxu0 0.0
    %1766 = vmatprep.subr.mxu0 0.0
    %1767 = vmatpush2.xpose.msra.mxu0 0.0
    %1768 = vmatprep.subr.mxu0 0.0
    %1769 = vmatpush2.xpose.msra.mxu0 0.0
    %1770 = vmatprep.subr.mxu0 0.0
    %1771 = vmatpush2.xpose.msra.mxu0 0.0
    %1772 = vmatprep.subr.mxu0 0.0
    %1773 = vmatpush2.xpose.msra.mxu0 0.0
    %1774 = vmatprep.mubr.f32.mxu0 0.0
    %1775 = vmatmul.mubr.f32.gmra.mxu0 %v1706
    %v1776 = vpop.f32.mrf.mxu0
    %v1777 = vadd.f32 0.0, %v1776
    %v1778 = vpop.f32.mrf.mxu0
    %1779 = vdwg.mxu0
    %v1780 = vmul.f32 %v1699, 0.35355338
    %v1781 = vmul.f32 %v1777, 0.35355338
    %v1782 = vsel %vm537, %v1780, -1000000.0
    %v1783 = vsel %vm538, %v1781, -1000000.0
    %v1784 = vsel %vm380, %v1782, -inf
    %1785 = vmax.xlane.f32.xlu0 %v1784
    %v1786 = vpop.xlane.xlu0 %1785
    %v1787 = vsel %vm380, %v1783, -inf
    %1788 = vmax.xlane.f32.xlu0 %v1787
    %v1789 = vpop.xlane.xlu0 %1788
    %v1790 = vsub.f32 %v1782, %v1786
    %v1791 = vsub.f32 %v1783, %v1789
    %v1792 = vmul.f32 %v1790, 1.442695
    %v1793 = vpow.pop %v1792
    %v1794 = vmul.f32 %v1791, 1.442695
    %v1795 = vpow.pop %v1794
    %v1796 = vsel %vm380, %v1793, 0.0
    %1797 = vadd.xlane.f32.xlu0 %v1796
    %v1798 = vpop.xlane.xlu0 %1797
    %v1799 = vsel %vm380, %v1795, 0.0
    %1800 = vadd.xlane.f32.xlu0 %v1799
    %v1801 = vpop.xlane.xlu0 %1800
    %v1802 = vrcp.pop %v1798
    %v1803 = vrcp.pop %v1801
    %v1804 = vmul.f32 %v1793, %v1802
    %v1805 = vmul.f32 %v1795, %v1803
    %1806 = vrot.lane.b32.xlu0 %v327, 104
    %v1807 = vpop.permute.xlu0 %1806
    %v1810 = vsel %vm380, %v1804, 0
    %1812 = vmatprep.subr.mxu0 0.0
    %1813 = vmatpush1.msra.mxu0 0.0
    %1814 = vmatprep.subr.mxu0 0.0
    %1815 = vmatpush1.msra.mxu0 0.0
    %1816 = vmatprep.subr.mxu0 0.0
    %1817 = vmatpush1.msra.mxu0 0.0
    %1818 = vmatprep.subr.mxu0 0.0
    %1819 = vmatpush1.msra.mxu0 0.0
    %1820 = vmatprep.subr.mxu0 0.0
    %1821 = vmatpush1.msra.mxu0 0.0
    %1822 = vmatprep.subr.mxu0 0.0
    %1823 = vmatpush1.msra.mxu0 0.0
    %1824 = vmatprep.subr.mxu0 0.0
    %1825 = vmatpush1.msra.mxu0 0.0
    %1826 = vmatprep.subr.mxu0 0.0
    %1827 = vmatpush1.msra.mxu0 0.0
    %1828 = vmatprep.subr.mxu0 0.0
    %1829 = vmatpush1.msra.mxu0 0.0
    %1830 = vmatprep.subr.mxu0 0.0
    %1831 = vmatpush1.msra.mxu0 0.0
    %1832 = vmatprep.subr.mxu0 0.0
    %1833 = vmatpush1.msra.mxu0 0.0
    %1834 = vmatprep.subr.mxu0 0.0
    %1835 = vmatpush1.msra.mxu0 0.0
    %1836 = vmatprep.subr.mxu0 0.0
    %1837 = vmatpush1.msra.mxu0 0.0
    %1838 = vmatprep.subr.mxu0 0.0
    %1839 = vmatpush1.msra.mxu0 0.0
    %1840 = vmatprep.subr.mxu0 0.0
    %1841 = vmatpush1.msra.mxu0 0.0
    %1842 = vmatprep.subr.mxu0 0.0
    %1843 = vmatpush1.msra.mxu0 %v1807
    %1844 = vmatprep.subr.mxu0 0.0
    %1845 = vmatpush2.msra.mxu0 0.0
    %1846 = vmatprep.subr.mxu0 0.0
    %1847 = vmatpush2.msra.mxu0 0.0
    %1848 = vmatprep.subr.mxu0 0.0
    %1849 = vmatpush2.msra.mxu0 0.0
    %1850 = vmatprep.subr.mxu0 0.0
    %1851 = vmatpush2.msra.mxu0 0.0
    %1852 = vmatprep.subr.mxu0 0.0
    %1853 = vmatpush2.msra.mxu0 0.0
    %1854 = vmatprep.subr.mxu0 0.0
    %1855 = vmatpush2.msra.mxu0 0.0
    %1856 = vmatprep.subr.mxu0 0.0
    %1857 = vmatpush2.msra.mxu0 0.0
    %1858 = vmatprep.subr.mxu0 0.0
    %1859 = vmatpush2.msra.mxu0 0.0
    %1860 = vmatprep.subr.mxu0 0.0
    %1861 = vmatpush2.msra.mxu0 0.0
    %1862 = vmatprep.subr.mxu0 0.0
    %1863 = vmatpush2.msra.mxu0 0.0
    %1864 = vmatprep.subr.mxu0 0.0
    %1865 = vmatpush2.msra.mxu0 0.0
    %1866 = vmatprep.subr.mxu0 0.0
    %1867 = vmatpush2.msra.mxu0 0.0
    %1868 = vmatprep.subr.mxu0 0.0
    %1869 = vmatpush2.msra.mxu0 0.0
    %1870 = vmatprep.subr.mxu0 0.0
    %1871 = vmatpush2.msra.mxu0 0.0
    %1872 = vmatprep.subr.mxu0 0.0
    %1873 = vmatpush2.msra.mxu0 0.0
    %1874 = vmatprep.subr.mxu0 0.0
    %1875 = vmatpush2.msra.mxu0 0.0
    %1876 = vmatprep.mubr.f32.mxu0 0.0
    %1877 = vmatmul.mubr.f32.gmra.mxu0 %v1810
    %v1878 = vpop.f32.mrf.mxu0
    %v1879 = vadd.f32 0.0, %v1878
    %v1880 = vpop.f32.mrf.mxu0
    %1881 = vdwg.mxu0
    %1882 = vrot.lane.b32.xlu0 %v332, 104
    %v1883 = vpop.permute.xlu0 %1882
    %v1886 = vsel %vm380, %v1805, 0
    %1888 = vmatprep.subr.mxu0 0.0
    %1889 = vmatpush1.msra.mxu0 0.0
    %1890 = vmatprep.subr.mxu0 0.0
    %1891 = vmatpush1.msra.mxu0 0.0
    %1892 = vmatprep.subr.mxu0 0.0
    %1893 = vmatpush1.msra.mxu0 0.0
    %1894 = vmatprep.subr.mxu0 0.0
    %1895 = vmatpush1.msra.mxu0 0.0
    %1896 = vmatprep.subr.mxu0 0.0
    %1897 = vmatpush1.msra.mxu0 0.0
    %1898 = vmatprep.subr.mxu0 0.0
    %1899 = vmatpush1.msra.mxu0 0.0
    %1900 = vmatprep.subr.mxu0 0.0
    %1901 = vmatpush1.msra.mxu0 0.0
    %1902 = vmatprep.subr.mxu0 0.0
    %1903 = vmatpush1.msra.mxu0 0.0
    %1904 = vmatprep.subr.mxu0 0.0
    %1905 = vmatpush1.msra.mxu0 0.0
    %1906 = vmatprep.subr.mxu0 0.0
    %1907 = vmatpush1.msra.mxu0 0.0
    %1908 = vmatprep.subr.mxu0 0.0
    %1909 = vmatpush1.msra.mxu0 0.0
    %1910 = vmatprep.subr.mxu0 0.0
    %1911 = vmatpush1.msra.mxu0 0.0
    %1912 = vmatprep.subr.mxu0 0.0
    %1913 = vmatpush1.msra.mxu0 0.0
    %1914 = vmatprep.subr.mxu0 0.0
    %1915 = vmatpush1.msra.mxu0 0.0
    %1916 = vmatprep.subr.mxu0 0.0
    %1917 = vmatpush1.msra.mxu0 0.0
    %1918 = vmatprep.subr.mxu0 0.0
    %1919 = vmatpush1.msra.mxu0 %v1883
    %1920 = vmatprep.subr.mxu0 0.0
    %1921 = vmatpush2.msra.mxu0 0.0
    %1922 = vmatprep.subr.mxu0 0.0
    %1923 = vmatpush2.msra.mxu0 0.0
    %1924 = vmatprep.subr.mxu0 0.0
    %1925 = vmatpush2.msra.mxu0 0.0
    %1926 = vmatprep.subr.mxu0 0.0
    %1927 = vmatpush2.msra.mxu0 0.0
    %1928 = vmatprep.subr.mxu0 0.0
    %1929 = vmatpush2.msra.mxu0 0.0
    %1930 = vmatprep.subr.mxu0 0.0
    %1931 = vmatpush2.msra.mxu0 0.0
    %1932 = vmatprep.subr.mxu0 0.0
    %1933 = vmatpush2.msra.mxu0 0.0
    %1934 = vmatprep.subr.mxu0 0.0
    %1935 = vmatpush2.msra.mxu0 0.0
    %1936 = vmatprep.subr.mxu0 0.0
    %1937 = vmatpush2.msra.mxu0 0.0
    %1938 = vmatprep.subr.mxu0 0.0
    %1939 = vmatpush2.msra.mxu0 0.0
    %1940 = vmatprep.subr.mxu0 0.0
    %1941 = vmatpush2.msra.mxu0 0.0
    %1942 = vmatprep.subr.mxu0 0.0
    %1943 = vmatpush2.msra.mxu0 0.0
    %1944 = vmatprep.subr.mxu0 0.0
    %1945 = vmatpush2.msra.mxu0 0.0
    %1946 = vmatprep.subr.mxu0 0.0
    %1947 = vmatpush2.msra.mxu0 0.0
    %1948 = vmatprep.subr.mxu0 0.0
    %1949 = vmatpush2.msra.mxu0 0.0
    %1950 = vmatprep.subr.mxu0 0.0
    %1951 = vmatpush2.msra.mxu0 0.0
    %1952 = vmatprep.mubr.f32.mxu0 0.0
    %1953 = vmatmul.mubr.f32.gmra.mxu0 %v1886
    %v1954 = vpop.f32.mrf.mxu0
    %v1955 = vadd.f32 0.0, %v1954
    %v1956 = vpop.f32.mrf.mxu0
    %1957 = vdwg.mxu0
    %v1959 = vsel %vm380, %v1879, 0
    %v1962 = vsel %vm380, %v1955, 0
    %1964 = vmatprep.subr.mxu0 0.0
    %1965 = vmatpush1.msra.mxu0 0.0
    %1966 = vmatprep.subr.mxu0 0.0
    %1967 = vmatpush1.msra.mxu0 0.0
    %1968 = vmatprep.subr.mxu0 0.0
    %1969 = vmatpush1.msra.mxu0 0.0
    %1970 = vmatprep.subr.mxu0 0.0
    %1971 = vmatpush1.msra.mxu0 0.0
    %1972 = vmatprep.subr.mxu0 0.0
    %1973 = vmatpush1.msra.mxu0 0.0
    %1974 = vmatprep.subr.mxu0 0.0
    %1975 = vmatpush1.msra.mxu0 0.0
    %1976 = vmatprep.subr.mxu0 0.0
    %1977 = vmatpush1.msra.mxu0 0.0
    %1978 = vmatprep.subr.mxu0 0.0
    %1979 = vmatpush1.msra.mxu0 0.0
    %1980 = vmatprep.subr.mxu0 0.0
    %1981 = vmatpush1.msra.mxu0 0.0
    %1982 = vmatprep.subr.mxu0 0.0
    %1983 = vmatpush1.msra.mxu0 0.0
    %1984 = vmatprep.subr.mxu0 0.0
    %1985 = vmatpush1.msra.mxu0 0.0
    %1986 = vmatprep.subr.mxu0 0.0
    %1987 = vmatpush1.msra.mxu0 0.0
    %1988 = vmatprep.subr.mxu0 0.0
    %1989 = vmatpush1.msra.mxu0 0.0
    %1990 = vmatprep.subr.mxu0 0.0
    %1991 = vmatpush1.msra.mxu0 0.0
    %1992 = vmatprep.subr.mxu0 0.0
    %1993 = vmatpush1.msra.mxu0 0.0
    %1994 = vmatprep.subr.mxu0 0.0
    %1995 = vmatpush1.msra.mxu0 %v379
    %1996 = vmatprep.subr.mxu0 0.0
    %1997 = vmatpush2.msra.mxu0 0.0
    %1998 = vmatprep.subr.mxu0 0.0
    %1999 = vmatpush2.msra.mxu0 0.0
    %2000 = vmatprep.subr.mxu0 0.0
    %2001 = vmatpush2.msra.mxu0 0.0
    %2002 = vmatprep.subr.mxu0 0.0
    %2003 = vmatpush2.msra.mxu0 0.0
    %2004 = vmatprep.subr.mxu0 0.0
    %2005 = vmatpush2.msra.mxu0 0.0
    %2006 = vmatprep.subr.mxu0 0.0
    %2007 = vmatpush2.msra.mxu0 0.0
    %2008 = vmatprep.subr.mxu0 0.0
    %2009 = vmatpush2.msra.mxu0 0.0
    %2010 = vmatprep.subr.mxu0 0.0
    %2011 = vmatpush2.msra.mxu0 0.0
    %2012 = vmatprep.subr.mxu0 0.0
    %2013 = vmatpush2.msra.mxu0 0.0
    %2014 = vmatprep.subr.mxu0 0.0
    %2015 = vmatpush2.msra.mxu0 0.0
    %2016 = vmatprep.subr.mxu0 0.0
    %2017 = vmatpush2.msra.mxu0 0.0
    %2018 = vmatprep.subr.mxu0 0.0
    %2019 = vmatpush2.msra.mxu0 0.0
    %2020 = vmatprep.subr.mxu0 0.0
    %2021 = vmatpush2.msra.mxu0 0.0
    %2022 = vmatprep.subr.mxu0 0.0
    %2023 = vmatpush2.msra.mxu0 0.0
    %2024 = vmatprep.subr.mxu0 0.0
    %2025 = vmatpush2.msra.mxu0 0.0
    %2026 = vmatprep.subr.mxu0 0.0
    %2027 = vmatpush2.msra.mxu0 0.0
    %2028 = vmatprep.mubr.f32.mxu0 0.0
    %2029 = vmatmul.mubr.f32.gmra.mxu0 %v1959
    %v2030 = vpop.f32.mrf.mxu0
    %v2031 = vadd.f32 0.0, %v2030
    %v2032 = vpop.f32.mrf.mxu0
    %2033 = vmatprep.mubr.f32.mxu0 0.0
    %2034 = vmatmul.mubr.f32.gmra.mxu0 %v1962
    %v2035 = vpop.f32.mrf.mxu0
    %v2036 = vadd.f32 0.0, %v2035
    %v2037 = vpop.f32.mrf.mxu0
    %2038 = vdwg.mxu0
    %v2039 = vadd.f32 %v1622, %v2031
    %v2040 = vadd.f32 %v1623, %v2036
    %v2041 = vadd.f32 %v89, %v2039
    %v2042 = vadd.f32 %v90, %v2040
    %v2043 = vld [vmem:[%s6] sm:$0x1]
    %v2044 = vld [vmem:[%s7] sm:$0x1]
    %v2045 = vsel %vm95, %v2041, 0.0
    %2046 = vadd.xlane.f32.xlu0 %v2045
    %v2047 = vpop.xlane.xlu0 %2046
    %v2048 = vsel %vm95, %v2042, 0.0
    %2049 = vadd.xlane.f32.xlu0 %v2048
    %v2050 = vpop.xlane.xlu0 %2049
    %v2051 = vrcp.pop 32.0
    %v2052 = vmul.f32 %v2047, %v2051
    %v2053 = vmul.f32 %v2050, %v2051
    %v2054 = vsub.f32 %v2041, %v2052
    %v2055 = vsub.f32 %v2042, %v2053
    %v2056 = vmul.f32 %v2054, %v2054
    %v2057 = vmul.f32 %v2055, %v2055
    %v2058 = vsel %vm95, %v2056, 0.0
    %2059 = vadd.xlane.f32.xlu0 %v2058
    %v2060 = vpop.xlane.xlu0 %2059
    %v2061 = vsel %vm95, %v2057, 0.0
    %2062 = vadd.xlane.f32.xlu0 %v2061
    %v2063 = vpop.xlane.xlu0 %2062
    %v2064 = vmul.f32 %v2060, %v2051
    %v2065 = vmul.f32 %v2063, %v2051
    %v2066 = vadd.f32 %v2064, 1e-05
    %v2067 = vadd.f32 %v2065, 1e-05
    %v2068 = vrsqrt.pop %v2066
    %v2069 = vrsqrt.pop %v2067
    %v2070 = vmul.f32 %v2054, %v2068
    %v2071 = vmul.f32 %v2055, %v2069
    %v2073 = vlaneseq
    %v2074 = vshrl.u32 %v2073, 7
    %v2075 = vsub.s32 0, %v2074
    %v2076 = vrot.slane %v2043, %v2075
    %v2078 = vmul.f32 %v2070, %v2076
    %v2079 = vmul.f32 %v2071, %v2076
    %v2081 = vlaneseq
    %v2082 = vshrl.u32 %v2081, 7
    %v2083 = vsub.s32 0, %v2082
    %v2084 = vrot.slane %v2044, %v2083
    %v2086 = vadd.f32 %v2078, %v2084
    %v2087 = vadd.f32 %v2079, %v2084
    %v2088 = vld [vmem:[#allocation7] sm:$0xff]
    %v2089 = vld [vmem:[#allocation7 + $0x8] sm:$0xff]
    %v2090 = vld [vmem:[#allocation7 + $0x10] sm:$0xff]
    %v2091 = vld [vmem:[#allocation7 + $0x18] sm:$0xff]
    %v2092 = vld [vmem:[%s9] sm:$0x1]
    %v2094 = vlaneseq
    %v2095 = vshrl.u32 %v2094, 7
    %v2096 = vsub.s32 0, %v2095
    %v2097 = vrot.slane %v2092, %v2096
    %v2100 = vsel %vm95, %v2086, 0
    %v2103 = vsel %vm95, %v2087, 0
    %2105 = vmatprep.subr.mxu0 0.0
    %2106 = vmatpush1.msra.mxu0 0.0
    %2107 = vmatprep.subr.mxu0 0.0
    %2108 = vmatpush1.msra.mxu0 0.0
    %2109 = vmatprep.subr.mxu0 0.0
    %2110 = vmatpush1.msra.mxu0 0.0
    %2111 = vmatprep.subr.mxu0 0.0
    %2112 = vmatpush1.msra.mxu0 0.0
    %2113 = vmatprep.subr.mxu0 0.0
    %2114 = vmatpush1.msra.mxu0 0.0
    %2115 = vmatprep.subr.mxu0 0.0
    %2116 = vmatpush1.msra.mxu0 0.0
    %2117 = vmatprep.subr.mxu0 0.0
    %2118 = vmatpush1.msra.mxu0 0.0
    %2119 = vmatprep.subr.mxu0 0.0
    %2120 = vmatpush1.msra.mxu0 0.0
    %2121 = vmatprep.subr.mxu0 0.0
    %2122 = vmatpush1.msra.mxu0 0.0
    %2123 = vmatprep.subr.mxu0 0.0
    %2124 = vmatpush1.msra.mxu0 0.0
    %2125 = vmatprep.subr.mxu0 0.0
    %2126 = vmatpush1.msra.mxu0 0.0
    %2127 = vmatprep.subr.mxu0 0.0
    %2128 = vmatpush1.msra.mxu0 0.0
    %2129 = vmatprep.subr.mxu0 0.0
    %2130 = vmatpush1.msra.mxu0 %v2091
    %2131 = vmatprep.subr.mxu0 0.0
    %2132 = vmatpush1.msra.mxu0 %v2090
    %2133 = vmatprep.subr.mxu0 0.0
    %2134 = vmatpush1.msra.mxu0 %v2089
    %2135 = vmatprep.subr.mxu0 0.0
    %2136 = vmatpush1.msra.mxu0 %v2088
    %2137 = vmatprep.subr.mxu0 0.0
    %2138 = vmatpush2.msra.mxu0 0.0
    %2139 = vmatprep.subr.mxu0 0.0
    %2140 = vmatpush2.msra.mxu0 0.0
    %2141 = vmatprep.subr.mxu0 0.0
    %2142 = vmatpush2.msra.mxu0 0.0
    %2143 = vmatprep.subr.mxu0 0.0
    %2144 = vmatpush2.msra.mxu0 0.0
    %2145 = vmatprep.subr.mxu0 0.0
    %2146 = vmatpush2.msra.mxu0 0.0
    %2147 = vmatprep.subr.mxu0 0.0
    %2148 = vmatpush2.msra.mxu0 0.0
    %2149 = vmatprep.subr.mxu0 0.0
    %2150 = vmatpush2.msra.mxu0 0.0
    %2151 = vmatprep.subr.mxu0 0.0
    %2152 = vmatpush2.msra.mxu0 0.0
    %2153 = vmatprep.subr.mxu0 0.0
    %2154 = vmatpush2.msra.mxu0 0.0
    %2155 = vmatprep.subr.mxu0 0.0
    %2156 = vmatpush2.msra.mxu0 0.0
    %2157 = vmatprep.subr.mxu0 0.0
    %2158 = vmatpush2.msra.mxu0 0.0
    %2159 = vmatprep.subr.mxu0 0.0
    %2160 = vmatpush2.msra.mxu0 0.0
    %2161 = vmatprep.subr.mxu0 0.0
    %2162 = vmatpush2.msra.mxu0 0.0
    %2163 = vmatprep.subr.mxu0 0.0
    %2164 = vmatpush2.msra.mxu0 0.0
    %2165 = vmatprep.subr.mxu0 0.0
    %2166 = vmatpush2.msra.mxu0 0.0
    %2167 = vmatprep.subr.mxu0 0.0
    %2168 = vmatpush2.msra.mxu0 0.0
    %2169 = vmatprep.mubr.f32.mxu0 0.0
    %2170 = vmatmul.mubr.f32.gmra.mxu0 %v2100
    %v2171 = vpop.f32.mrf.mxu0
    %v2172 = vadd.f32 %v2097, %v2171
    %v2173 = vpop.f32.mrf.mxu0
    %2174 = vmatprep.mubr.f32.mxu0 0.0
    %2175 = vmatmul.mubr.f32.gmra.mxu0 %v2103
    %v2176 = vpop.f32.mrf.mxu0
    %v2177 = vadd.f32 %v2097, %v2176
    %v2178 = vpop.f32.mrf.mxu0
    %2179 = vdwg.mxu0
    %v2180 = vmax.f32 %v2172, 0.0
    %v2181 = vmax.f32 %v2177, 0.0
    %v2182 = vld [vmem:[%s10] sm:$0xff]
    %v2183 = vld [vmem:[%s10 + $0x8] sm:$0xff]
    %v2184 = vld [vmem:[%s10 + $0x10] sm:$0xff]
    %v2185 = vld [vmem:[%s10 + $0x18] sm:$0xff]
    %v2186 = vld [vmem:[%s10 + $0x20] sm:$0xff]
    %v2187 = vld [vmem:[%s10 + $0x28] sm:$0xff]
    %v2188 = vld [vmem:[%s10 + $0x30] sm:$0xff]
    %v2189 = vld [vmem:[%s10 + $0x38] sm:$0xff]
    %v2190 = vld [vmem:[%s11] sm:$0x1]
    %v2192 = vlaneseq
    %v2193 = vshrl.u32 %v2192, 7
    %v2194 = vsub.s32 0, %v2193
    %v2195 = vrot.slane %v2190, %v2194
    %vm2197 = vcmask 523264
    %v2199 = vsel %vm2197, %v2180, 0
    %v2202 = vsel %vm2197, %v2181, 0
    %2204 = vmatprep.subr.mxu0 0.0
    %2205 = vmatpush1.msra.mxu0 0.0
    %2206 = vmatprep.subr.mxu0 0.0
    %2207 = vmatpush1.msra.mxu0 0.0
    %2208 = vmatprep.subr.mxu0 0.0
    %2209 = vmatpush1.msra.mxu0 0.0
    %2210 = vmatprep.subr.mxu0 0.0
    %2211 = vmatpush1.msra.mxu0 0.0
    %2212 = vmatprep.subr.mxu0 0.0
    %2213 = vmatpush1.msra.mxu0 0.0
    %2214 = vmatprep.subr.mxu0 0.0
    %2215 = vmatpush1.msra.mxu0 0.0
    %2216 = vmatprep.subr.mxu0 0.0
    %2217 = vmatpush1.msra.mxu0 0.0
    %2218 = vmatprep.subr.mxu0 0.0
    %2219 = vmatpush1.msra.mxu0 0.0
    %2220 = vmatprep.subr.mxu0 0.0
    %2221 = vmatpush1.msra.mxu0 %v2189
    %2222 = vmatprep.subr.mxu0 0.0
    %2223 = vmatpush1.msra.mxu0 %v2188
    %2224 = vmatprep.subr.mxu0 0.0
    %2225 = vmatpush1.msra.mxu0 %v2187
    %2226 = vmatprep.subr.mxu0 0.0
    %2227 = vmatpush1.msra.mxu0 %v2186
    %2228 = vmatprep.subr.mxu0 0.0
    %2229 = vmatpush1.msra.mxu0 %v2185
    %2230 = vmatprep.subr.mxu0 0.0
    %2231 = vmatpush1.msra.mxu0 %v2184
    %2232 = vmatprep.subr.mxu0 0.0
    %2233 = vmatpush1.msra.mxu0 %v2183
    %2234 = vmatprep.subr.mxu0 0.0
    %2235 = vmatpush1.msra.mxu0 %v2182
    %2236 = vmatprep.subr.mxu0 0.0
    %2237 = vmatpush2.msra.mxu0 0.0
    %2238 = vmatprep.subr.mxu0 0.0
    %2239 = vmatpush2.msra.mxu0 0.0
    %2240 = vmatprep.subr.mxu0 0.0
    %2241 = vmatpush2.msra.mxu0 0.0
    %2242 = vmatprep.subr.mxu0 0.0
    %2243 = vmatpush2.msra.mxu0 0.0
    %2244 = vmatprep.subr.mxu0 0.0
    %2245 = vmatpush2.msra.mxu0 0.0
    %2246 = vmatprep.subr.mxu0 0.0
    %2247 = vmatpush2.msra.mxu0 0.0
    %2248 = vmatprep.subr.mxu0 0.0
    %2249 = vmatpush2.msra.mxu0 0.0
    %2250 = vmatprep.subr.mxu0 0.0
    %2251 = vmatpush2.msra.mxu0 0.0
    %2252 = vmatprep.subr.mxu0 0.0
    %2253 = vmatpush2.msra.mxu0 0.0
    %2254 = vmatprep.subr.mxu0 0.0
    %2255 = vmatpush2.msra.mxu0 0.0
    %2256 = vmatprep.subr.mxu0 0.0
    %2257 = vmatpush2.msra.mxu0 0.0
    %2258 = vmatprep.subr.mxu0 0.0
    %2259 = vmatpush2.msra.mxu0 0.0
    %2260 = vmatprep.subr.mxu0 0.0
    %2261 = vmatpush2.msra.mxu0 0.0
    %2262 = vmatprep.subr.mxu0 0.0
    %2263 = vmatpush2.msra.mxu0 0.0
    %2264 = vmatprep.subr.mxu0 0.0
    %2265 = vmatpush2.msra.mxu0 0.0
    %2266 = vmatprep.subr.mxu0 0.0
    %2267 = vmatpush2.msra.mxu0 0.0
    %2268 = vmatprep.mubr.f32.mxu0 0.0
    %2269 = vmatmul.mubr.f32.gmra.mxu0 %v2199
    %v2270 = vpop.f32.mrf.mxu0
    %v2271 = vadd.f32 %v2195, %v2270
    %v2272 = vpop.f32.mrf.mxu0
    %2273 = vmatprep.mubr.f32.mxu0 0.0
    %2274 = vmatmul.mubr.f32.gmra.mxu0 %v2202
    %v2275 = vpop.f32.mrf.mxu0
    %v2276 = vadd.f32 %v2195, %v2275
    %v2277 = vpop.f32.mrf.mxu0
    %2278 = vdwg.mxu0
    %v2279 = vadd.f32 %v2086, %v2271
    %v2280 = vadd.f32 %v2087, %v2276
    %v2281 = vld [vmem:[%s12] sm:$0x1]
    %v2282 = vld [vmem:[%s13] sm:$0x1]
    %v2283 = vsel %vm95, %v2279, 0.0
    %2284 = vadd.xlane.f32.xlu0 %v2283
    %v2285 = vpop.xlane.xlu0 %2284
    %v2286 = vsel %vm95, %v2280, 0.0
    %2287 = vadd.xlane.f32.xlu0 %v2286
    %v2288 = vpop.xlane.xlu0 %2287
    %v2289 = vmul.f32 %v2285, %v2051
    %v2290 = vmul.f32 %v2288, %v2051
    %v2291 = vsub.f32 %v2279, %v2289
    %v2292 = vsub.f32 %v2280, %v2290
    %v2293 = vmul.f32 %v2291, %v2291
    %v2294 = vmul.f32 %v2292, %v2292
    %v2295 = vsel %vm95, %v2293, 0.0
    %2296 = vadd.xlane.f32.xlu0 %v2295
    %v2297 = vpop.xlane.xlu0 %2296
    %v2298 = vsel %vm95, %v2294, 0.0
    %2299 = vadd.xlane.f32.xlu0 %v2298
    %v2300 = vpop.xlane.xlu0 %2299
    %v2301 = vmul.f32 %v2297, %v2051
    %v2302 = vmul.f32 %v2300, %v2051
    %v2303 = vadd.f32 %v2301, 1e-05
    %v2304 = vadd.f32 %v2302, 1e-05
    %v2305 = vrsqrt.pop %v2303
    %v2306 = vrsqrt.pop %v2304
    %v2307 = vmul.f32 %v2291, %v2305
    %v2308 = vmul.f32 %v2292, %v2306
    %v2310 = vlaneseq
    %v2311 = vshrl.u32 %v2310, 7
    %v2312 = vsub.s32 0, %v2311
    %v2313 = vrot.slane %v2281, %v2312
    %v2315 = vmul.f32 %v2307, %v2313
    %v2316 = vmul.f32 %v2308, %v2313
    %v2318 = vlaneseq
    %v2319 = vshrl.u32 %v2318, 7
    %v2320 = vsub.s32 0, %v2319
    %v2321 = vrot.slane %v2282, %v2320
    %v2323 = vadd.f32 %v2315, %v2321
    %v2324 = vadd.f32 %v2316, %v2321
    %2325 = vst.msk [vmem:[#allocation8] sm:$0xff] %vm95, %v2323
    %2326 = vst.msk [vmem:[#allocation8 + $0x8] sm:$0xff] %vm95, %v2324
    // Predicated region
    $region70: #{tpu_custom_call.1} parent=1 // pred_check
      _
    $region71: #{tpu_custom_call.1} parent=1 // pred_check_branch
      %2328 = sbr.rel (0) target = $region73
    $region72: #{tpu_custom_call.1} parent=1 // pred_region
      %s2330 = ssub.s32 256, 256
      %2331 = vsyncadd [#allocation4], %s2330
      %s2332 = sshll.u32 [#allocation8], 4
      %s2333 = int_to_ptr.vmem [resolvable:$true] %s2332
      %2338 = dma.vmem_to_hbm [thread:$0]  %s2333, 256, %s14, [#allocation4], 128, 128, 8
    $region73: #{tpu_custom_call.1} parent=1 // pred_fallthru
      _
    // Predicated region
    $region74: #{tpu_custom_call.1} parent=1 // pred_check
      _
    $region75: #{tpu_custom_call.1} parent=1 // pred_check_branch
      %2340 = sbr.rel (0) target = $region77
    $region76: #{tpu_custom_call.1} parent=1 // pred_region
      %2341 = dma.done [#allocation4], 256
    $region77: #{tpu_custom_call.1} parent=1 // pred_fallthru
      _
    %2342 = vsyncpa [#allocation3], 1
    %2343 = vsyncpa [#allocation6], 1
    %2344 = vsyncpa [#allocation4], 1

</llo_original>
